<compile_context>
chip_gen: v7x
topology: tpu7x:2x2x1
jax: 0.10.0
libtpu: 0.0.40
codegen_flags: <defaults>
</compile_context>

<pallas_src>
import jax
import jax.numpy as jnp
from jax.experimental import pallas as pl
from jax.experimental.pallas import tpu as pltpu

LANE = 128
EPS = 1e-5


def _round_up(v, m):
    return (v + m - 1) // m * m


def _bottleneck_kernel(x_ref, w1_ref, s1_ref, b1_ref,
                       w2_ref, s2_ref, b2_ref,
                       w3_ref, s3_ref, b3_ref,
                       o_ref, pad_ref, col_ref):
    H, W, Cin = x_ref.shape[1], x_ref.shape[2], x_ref.shape[3]
    Cmid = w1_ref.shape[1]
    Cout = w3_ref.shape[1]
    HW = H * W

    # conv1 (1x1) + folded BN1 + ReLU.  bf16 x bf16 -> f32 accumulate on MXU.
    x = x_ref[0].reshape(HW, Cin)
    y1 = jnp.dot(x, w1_ref[...], preferred_element_type=jnp.float32)
    y1 = jnp.maximum(y1 * s1_ref[...] + b1_ref[...], 0.0)

    # Zero only the 1-pixel halo of the padded y1 scratch (interior is fully
    # overwritten every step) instead of the whole buffer.
    zrow = jnp.zeros((1, W + 2, Cmid), jnp.float32)
    zcol = jnp.zeros((H, 1, Cmid), jnp.float32)
    pad_ref[0:1, :, :] = zrow
    pad_ref[H + 1:H + 2, :, :] = zrow
    pad_ref[1:H + 1, 0:1, :] = zcol
    pad_ref[1:H + 1, W + 1:W + 2, :] = zcol
    pad_ref[1:H + 1, 1:W + 1, :] = y1.reshape(H, W, Cmid)

    # conv2 (3x3, stride=1, pad=1) as one im2col matmul: gather the 9 shifted
    # windows into a lane-aligned (HW, 9*Cmid) bf16 scratch, then a single
    # long-K dot on the MXU.
    for t in range(9):
        ky, kx = t // 3, t % 3
        col_ref[:, t * Cmid:(t + 1) * Cmid] = (
            pad_ref[ky:ky + H, kx:kx + W, :]
            .reshape(HW, Cmid).astype(jnp.bfloat16))
    y2 = jnp.dot(col_ref[...], w2_ref[...], preferred_element_type=jnp.float32)
    y2 = jnp.maximum(y2 * s2_ref[...] + b2_ref[...], 0.0)

    # conv3 (1x1) + folded BN3.
    y3 = jnp.dot(y2.astype(jnp.bfloat16), w3_ref[...],
                 preferred_element_type=jnp.float32)
    y3 = y3 * s3_ref[...] + b3_ref[...]

    # Residual add (Cin == Cout) + final ReLU.  Re-read x here so it is not
    # held live across the matmuls above.
    resid = x_ref[0].reshape(HW, Cout).astype(jnp.float32)
    out = jnp.maximum(y3 + resid, 0.0)
    o_ref[0] = out.reshape(H, W, Cout).astype(o_ref.dtype)


def bottleneck_local_pallas(x_nchw, p):
    """Forward of one bottleneck block (i_downsample=None, stride=1)."""
    N, Cin, H, W = x_nchw.shape
    Cmid = p["w1"].shape[0]
    Cout = p["w3"].shape[0]
    assert Cin == Cout, "i_downsample=None requires in_channels == 4*planes"

    Cin_p = _round_up(Cin, LANE)
    Cmid_p = _round_up(Cmid, LANE)
    Cout_p = _round_up(Cout, LANE)
    assert Cin_p == Cout_p

    # Fold eval-mode BN into per-channel scale/bias (f32), pad to lane multiple.
    def fold(conv_bias, gamma, beta, mean, var, cpad):
        scale = gamma / jnp.sqrt(var + EPS)
        bias = (conv_bias - mean) * scale + beta
        scale = jnp.pad(scale, (0, cpad - scale.shape[0]))
        bias = jnp.pad(bias, (0, cpad - bias.shape[0]))
        return scale[None, :], bias[None, :]

    s1, b1 = fold(p["cb1"], p["g1"], p["be1"], p["m1"], p["v1"], Cmid_p)
    s2, b2 = fold(p["cb2"], p["g2"], p["be2"], p["m2"], p["v2"], Cmid_p)
    s3, b3 = fold(p["cb3"], p["g3"], p["be3"], p["m3"], p["v3"], Cout_p)

    # 1x1 conv weights -> matmul form, zero-padded to lane multiples.
    w1m = jnp.zeros((Cin_p, Cmid_p), jnp.float32)
    w1m = w1m.at[:Cin, :Cmid].set(jnp.transpose(p["w1"][:, :, 0, 0]))
    w3m = jnp.zeros((Cmid_p, Cout_p), jnp.float32)
    w3m = w3m.at[:Cmid, :Cout].set(jnp.transpose(p["w3"][:, :, 0, 0]))

    # 3x3 conv weights -> im2col form (9*Cmid_p, Cmid_p), tap-major rows.
    w2t = jnp.transpose(p["w2"], (2, 3, 1, 0)).reshape(9, Cmid, Cmid)
    w2c = jnp.zeros((9 * Cmid_p, Cmid_p), jnp.float32)
    for t in range(9):
        w2c = w2c.at[t * Cmid_p:t * Cmid_p + Cmid, :Cmid].set(w2t[t])

    w1m = w1m.astype(jnp.bfloat16)
    w2c = w2c.astype(jnp.bfloat16)
    w3m = w3m.astype(jnp.bfloat16)

    # NCHW -> NHWC, zero-pad channels to a lane multiple, bf16 operands.
    x = jnp.transpose(x_nchw, (0, 2, 3, 1))
    x = jnp.pad(x, ((0, 0), (0, 0), (0, 0), (0, Cin_p - Cin)))
    x = x.astype(jnp.bfloat16)

    def const2d(shape):
        return pl.BlockSpec(shape, lambda n: (0, 0))

    out = pl.pallas_call(
        _bottleneck_kernel,
        out_shape=jax.ShapeDtypeStruct((N, H, W, Cout_p), jnp.float32),
        grid=(N,),
        in_specs=[
            pl.BlockSpec((1, H, W, Cin_p), lambda n: (n, 0, 0, 0)),
            const2d((Cin_p, Cmid_p)), const2d((1, Cmid_p)), const2d((1, Cmid_p)),
            const2d((9 * Cmid_p, Cmid_p)), const2d((1, Cmid_p)), const2d((1, Cmid_p)),
            const2d((Cmid_p, Cout_p)), const2d((1, Cout_p)), const2d((1, Cout_p)),
        ],
        out_specs=pl.BlockSpec((1, H, W, Cout_p), lambda n: (n, 0, 0, 0)),
        scratch_shapes=[
            pltpu.VMEM((H + 2, W + 2, Cmid_p), jnp.float32),   # zero-padded y1
            pltpu.VMEM((H * W, 9 * Cmid_p), jnp.bfloat16),     # im2col matrix
        ],
        compiler_params=pltpu.CompilerParams(
            dimension_semantics=("parallel",)),
        # TODO(synk): for v7x (64 MiB VMEM) and large ResNet stages, single-buffer
        # the grid-invariant weight specs and add a row-tiled spatial grid axis
        # with halo overlap; not needed at these small shapes.
    )(x, w1m, s1, b1, w2c, s2, b2, w3m, s3, b3)

    out = out[:, :, :, :Cout]            # drop channel padding
    return jnp.transpose(out, (0, 3, 1, 2))


# ---------------- parameter setup + pure-JAX reference (glue) ----------------

def make_params(key, in_channels, out_channels):
    exp = 4
    Cout = out_channels * exp
    ks = jax.random.split(key, 16)
    p = {}
    p["w1"] = 0.1 * jax.random.normal(ks[0], (out_channels, in_channels, 1, 1), jnp.float32)
    p["cb1"] = 0.05 * jax.random.normal(ks[1], (out_channels,), jnp.float32)
    p["g1"] = 1.0 + 0.1 * jax.random.normal(ks[2], (out_channels,), jnp.float32)
    p["be1"] = 0.05 * jax.random.normal(ks[3], (out_channels,), jnp.float32)
    p["m1"] = 0.05 * jax.random.normal(ks[4], (out_channels,), jnp.float32)
    p["v1"] = 1.0 + 0.1 * jnp.abs(jax.random.normal(ks[5], (out_channels,), jnp.float32))

    p["w2"] = 0.1 * jax.random.normal(ks[6], (out_channels, out_channels, 3, 3), jnp.float32)
    p["cb2"] = 0.05 * jax.random.normal(ks[7], (out_channels,), jnp.float32)
    p["g2"] = 1.0 + 0.1 * jax.random.normal(ks[8], (out_channels,), jnp.float32)
    p["be2"] = 0.05 * jax.random.normal(ks[9], (out_channels,), jnp.float32)
    p["m2"] = 0.05 * jax.random.normal(ks[10], (out_channels,), jnp.float32)
    p["v2"] = 1.0 + 0.1 * jnp.abs(jax.random.normal(ks[11], (out_channels,), jnp.float32))

    p["w3"] = 0.1 * jax.random.normal(ks[12], (Cout, out_channels, 1, 1), jnp.float32)
    p["cb3"] = 0.05 * jax.random.normal(ks[13], (Cout,), jnp.float32)
    p["g3"] = 1.0 + 0.1 * jax.random.normal(ks[14], (Cout,), jnp.float32)
    p["be3"] = 0.05 * jax.random.normal(ks[15], (Cout,), jnp.float32)
    p["m3"] = jnp.zeros((Cout,), jnp.float32)
    p["v3"] = jnp.ones((Cout,), jnp.float32)
    return p


def reference_nchw(x, p):
    def conv(x, w, b, stride, pad):
        y = jax.lax.conv_general_dilated(x, w, (stride, stride), [(pad, pad), (pad, pad)],
                                         dimension_numbers=("NCHW", "OIHW", "NCHW"))
        return y + b[None, :, None, None]

    def bn(x, g, be, m, v):
        return (x - m[None, :, None, None]) / jnp.sqrt(v[None, :, None, None] + EPS) \
            * g[None, :, None, None] + be[None, :, None, None]

    identity = x
    y = jax.nn.relu(bn(conv(x, p["w1"], p["cb1"], 1, 0), p["g1"], p["be1"], p["m1"], p["v1"]))
    y = jax.nn.relu(bn(conv(y, p["w2"], p["cb2"], 1, 1), p["g2"], p["be2"], p["m2"], p["v2"]))
    y = bn(conv(y, p["w3"], p["cb3"], 1, 0), p["g3"], p["be3"], p["m3"], p["v3"])
    return jax.nn.relu(y + identity)


if __name__ == "__main__":
    # small shapes: batch=2, planes=4 -> block output channels 16, so in_channels=16
    N, in_channels, out_channels, H, W = 2, 16, 4, 8, 8
    key = jax.random.PRNGKey(0)
    kx, kp = jax.random.split(key)
    x_nchw = jax.random.normal(kx, (N, in_channels, H, W), jnp.float32)
    p = make_params(kp, in_channels, out_channels)

    out = jax.block_until_ready(bottleneck_local_pallas(x_nchw, p))
    ref = jax.block_until_ready(reference_nchw(x_nchw, p))

    assert out.shape == ref.shape == (N, in_channels, H, W)
    # bf16 matmul operands vs f32 reference -> bf16-appropriate tolerance.
    max_err = float(jnp.max(jnp.abs(out - ref)))
    assert jnp.allclose(out, ref, atol=2e-2, rtol=2e-2), max_err

    # TODO(synk): i_downsample branch, stride>1 blocks, and the ResNet stem /
    # avgpool / VectorPad / fc head are not implemented as Pallas kernels here.
    print("KERNEL_OK")
</pallas_src>

<mosaic_0001>
module attributes {stable_mosaic.version = 11 : i64} {
  func.func @_bottleneck_kernel(%arg0: i32, %arg1: memref<1x8x8x128xbf16, #tpu.memory_space<vmem>>, %arg2: memref<128x128xbf16, #tpu.memory_space<vmem>>, %arg3: memref<1x128xf32, #tpu.memory_space<vmem>>, %arg4: memref<1x128xf32, #tpu.memory_space<vmem>>, %arg5: memref<1152x128xbf16, #tpu.memory_space<vmem>>, %arg6: memref<1x128xf32, #tpu.memory_space<vmem>>, %arg7: memref<1x128xf32, #tpu.memory_space<vmem>>, %arg8: memref<128x128xbf16, #tpu.memory_space<vmem>>, %arg9: memref<1x128xf32, #tpu.memory_space<vmem>>, %arg10: memref<1x128xf32, #tpu.memory_space<vmem>>, %arg11: memref<1x8x8x128xf32, #tpu.memory_space<vmem>>, %arg12: memref<10x10x128xf32, #tpu.memory_space<vmem>>, %arg13: memref<64x1152xbf16, #tpu.memory_space<vmem>>) attributes {dimension_semantics = [#tpu.dimension_semantics<parallel>], iteration_bounds = array<i64: 2>, scalar_prefetch = 0 : i64, scratch_operands = 2 : i64, tpu.core_type = #tpu.core_type<tc>, window_params = [{transform_indices = @transform_0, window_bounds = array<i64: 1, 8, 8, 128>}, {pipeline_mode = #tpu.pipeline_mode<synchronous>, transform_indices = @transform_1, window_bounds = array<i64: 128, 128>}, {pipeline_mode = #tpu.pipeline_mode<synchronous>, transform_indices = @transform_2, window_bounds = array<i64: 1, 128>}, {pipeline_mode = #tpu.pipeline_mode<synchronous>, transform_indices = @transform_3, window_bounds = array<i64: 1, 128>}, {pipeline_mode = #tpu.pipeline_mode<synchronous>, transform_indices = @transform_4, window_bounds = array<i64: 1152, 128>}, {pipeline_mode = #tpu.pipeline_mode<synchronous>, transform_indices = @transform_5, window_bounds = array<i64: 1, 128>}, {pipeline_mode = #tpu.pipeline_mode<synchronous>, transform_indices = @transform_6, window_bounds = array<i64: 1, 128>}, {pipeline_mode = #tpu.pipeline_mode<synchronous>, transform_indices = @transform_7, window_bounds = array<i64: 128, 128>}, {pipeline_mode = #tpu.pipeline_mode<synchronous>, transform_indices = @transform_8, window_bounds = array<i64: 1, 128>}, {pipeline_mode = #tpu.pipeline_mode<synchronous>, transform_indices = @transform_9, window_bounds = array<i64: 1, 128>}, {transform_indices = @transform_10, window_bounds = array<i64: 1, 8, 8, 128>}]} {
    %c0 = arith.constant 0 : index
    %c0_0 = arith.constant 0 : index
    %c0_1 = arith.constant 0 : index
    %c0_2 = arith.constant 0 : index
    %0 = vector.load %arg1[%c0, %c0_0, %c0_1, %c0_2] : memref<1x8x8x128xbf16, #tpu.memory_space<vmem>>, vector<1x8x8x128xbf16>
    %1 = vector.shape_cast %0 : vector<1x8x8x128xbf16> to vector<8x8x128xbf16>
    %2 = vector.shape_cast %1 : vector<8x8x128xbf16> to vector<64x128xbf16>
    %c0_3 = arith.constant 0 : index
    %c0_4 = arith.constant 0 : index
    %3 = vector.load %arg2[%c0_3, %c0_4] : memref<128x128xbf16, #tpu.memory_space<vmem>>, vector<128x128xbf16>
    %cst = arith.constant dense<0.000000e+00> : vector<64x128xf32>
    %4 = tpu.matmul %2, %3, %cst {dimension_numbers = #tpu.dot_dimension_numbers<[1], [0], [0], [1], [0, 0, 1, 1], [], []>} : vector<64x128xbf16>, vector<128x128xbf16>, vector<64x128xf32> -> vector<64x128xf32>
    %c0_5 = arith.constant 0 : index
    %c0_6 = arith.constant 0 : index
    %5 = vector.load %arg3[%c0_5, %c0_6] : memref<1x128xf32, #tpu.memory_space<vmem>>, vector<1x128xf32>
    %6 = vector.broadcast %5 : vector<1x128xf32> to vector<64x128xf32>
    %7 = arith.mulf %4, %6 : vector<64x128xf32>
    %c0_7 = arith.constant 0 : index
    %c0_8 = arith.constant 0 : index
    %8 = vector.load %arg4[%c0_7, %c0_8] : memref<1x128xf32, #tpu.memory_space<vmem>>, vector<1x128xf32>
    %9 = vector.broadcast %8 : vector<1x128xf32> to vector<64x128xf32>
    %10 = arith.addf %7, %9 : vector<64x128xf32>
    %cst_9 = arith.constant 0.000000e+00 : f32
    %11 = vector.broadcast %cst_9 : f32 to vector<64x128xf32>
    %12 = arith.maximumf %10, %11 : vector<64x128xf32>
    %cst_10 = arith.constant 0.000000e+00 : f32
    %13 = vector.broadcast %cst_10 : f32 to vector<1x10x128xf32>
    %cst_11 = arith.constant 0.000000e+00 : f32
    %14 = vector.broadcast %cst_11 : f32 to vector<8x1x128xf32>
    %c0_12 = arith.constant 0 : index
    %c0_13 = arith.constant 0 : index
    %c0_14 = arith.constant 0 : index
    %15 = vector.load %arg12[%c0_12, %c0_13, %c0_14] : memref<10x10x128xf32, #tpu.memory_space<vmem>>, vector<1x10x128xf32>
    tpu.vector_store %arg12[%c0_12, %c0_13, %c0_14], %13 {strides = array<i32>} : memref<10x10x128xf32, #tpu.memory_space<vmem>>, vector<1x10x128xf32>,
    %c9 = arith.constant 9 : index
    %c0_15 = arith.constant 0 : index
    %c0_16 = arith.constant 0 : index
    %16 = vector.load %arg12[%c9, %c0_15, %c0_16] : memref<10x10x128xf32, #tpu.memory_space<vmem>>, vector<1x10x128xf32>
    tpu.vector_store %arg12[%c9, %c0_15, %c0_16], %13 {strides = array<i32>} : memref<10x10x128xf32, #tpu.memory_space<vmem>>, vector<1x10x128xf32>,
    %c1 = arith.constant 1 : index
    %c0_17 = arith.constant 0 : index
    %c0_18 = arith.constant 0 : index
    %17 = vector.load %arg12[%c1, %c0_17, %c0_18] : memref<10x10x128xf32, #tpu.memory_space<vmem>>, vector<8x1x128xf32>
    tpu.vector_store %arg12[%c1, %c0_17, %c0_18], %14 {strides = array<i32>} : memref<10x10x128xf32, #tpu.memory_space<vmem>>, vector<8x1x128xf32>,
    %c1_19 = arith.constant 1 : index
    %c9_20 = arith.constant 9 : index
    %c0_21 = arith.constant 0 : index
    %18 = vector.load %arg12[%c1_19, %c9_20, %c0_21] : memref<10x10x128xf32, #tpu.memory_space<vmem>>, vector<8x1x128xf32>
    tpu.vector_store %arg12[%c1_19, %c9_20, %c0_21], %14 {strides = array<i32>} : memref<10x10x128xf32, #tpu.memory_space<vmem>>, vector<8x1x128xf32>,
    %19 = vector.shape_cast %12 : vector<64x128xf32> to vector<8x8x128xf32>
    %c1_22 = arith.constant 1 : index
    %c1_23 = arith.constant 1 : index
    %c0_24 = arith.constant 0 : index
    %20 = vector.load %arg12[%c1_22, %c1_23, %c0_24] : memref<10x10x128xf32, #tpu.memory_space<vmem>>, vector<8x8x128xf32>
    tpu.vector_store %arg12[%c1_22, %c1_23, %c0_24], %19 {strides = array<i32>} : memref<10x10x128xf32, #tpu.memory_space<vmem>>, vector<8x8x128xf32>,
    %c0_25 = arith.constant 0 : index
    %c0_26 = arith.constant 0 : index
    %c0_27 = arith.constant 0 : index
    %21 = vector.load %arg12[%c0_25, %c0_26, %c0_27] : memref<10x10x128xf32, #tpu.memory_space<vmem>>, vector<8x8x128xf32>
    %22 = vector.shape_cast %21 : vector<8x8x128xf32> to vector<64x128xf32>
    %23 = arith.truncf %22 : vector<64x128xf32> to vector<64x128xbf16>
    %c0_28 = arith.constant 0 : index
    %c0_29 = arith.constant 0 : index
    %24 = vector.load %arg13[%c0_28, %c0_29] : memref<64x1152xbf16, #tpu.memory_space<vmem>>, vector<64x128xbf16>
    tpu.vector_store %arg13[%c0_28, %c0_29], %23 {strides = array<i32>} : memref<64x1152xbf16, #tpu.memory_space<vmem>>, vector<64x128xbf16>,
    %c0_30 = arith.constant 0 : index
    %c1_31 = arith.constant 1 : index
    %c0_32 = arith.constant 0 : index
    %25 = vector.load %arg12[%c0_30, %c1_31, %c0_32] : memref<10x10x128xf32, #tpu.memory_space<vmem>>, vector<8x8x128xf32>
    %26 = vector.shape_cast %25 : vector<8x8x128xf32> to vector<64x128xf32>
    %27 = arith.truncf %26 : vector<64x128xf32> to vector<64x128xbf16>
    %c0_33 = arith.constant 0 : index
    %c128 = arith.constant 128 : index
    %28 = vector.load %arg13[%c0_33, %c128] : memref<64x1152xbf16, #tpu.memory_space<vmem>>, vector<64x128xbf16>
    tpu.vector_store %arg13[%c0_33, %c128], %27 {strides = array<i32>} : memref<64x1152xbf16, #tpu.memory_space<vmem>>, vector<64x128xbf16>,
    %c0_34 = arith.constant 0 : index
    %c2 = arith.constant 2 : index
    %c0_35 = arith.constant 0 : index
    %29 = vector.load %arg12[%c0_34, %c2, %c0_35] : memref<10x10x128xf32, #tpu.memory_space<vmem>>, vector<8x8x128xf32>
    %30 = vector.shape_cast %29 : vector<8x8x128xf32> to vector<64x128xf32>
    %31 = arith.truncf %30 : vector<64x128xf32> to vector<64x128xbf16>
    %c0_36 = arith.constant 0 : index
    %c256 = arith.constant 256 : index
    %32 = vector.load %arg13[%c0_36, %c256] : memref<64x1152xbf16, #tpu.memory_space<vmem>>, vector<64x128xbf16>
    tpu.vector_store %arg13[%c0_36, %c256], %31 {strides = array<i32>} : memref<64x1152xbf16, #tpu.memory_space<vmem>>, vector<64x128xbf16>,
    %c1_37 = arith.constant 1 : index
    %c0_38 = arith.constant 0 : index
    %c0_39 = arith.constant 0 : index
    %33 = vector.load %arg12[%c1_37, %c0_38, %c0_39] : memref<10x10x128xf32, #tpu.memory_space<vmem>>, vector<8x8x128xf32>
    %34 = vector.shape_cast %33 : vector<8x8x128xf32> to vector<64x128xf32>
    %35 = arith.truncf %34 : vector<64x128xf32> to vector<64x128xbf16>
    %c0_40 = arith.constant 0 : index
    %c384 = arith.constant 384 : index
    %36 = vector.load %arg13[%c0_40, %c384] : memref<64x1152xbf16, #tpu.memory_space<vmem>>, vector<64x128xbf16>
    tpu.vector_store %arg13[%c0_40, %c384], %35 {strides = array<i32>} : memref<64x1152xbf16, #tpu.memory_space<vmem>>, vector<64x128xbf16>,
    %c1_41 = arith.constant 1 : index
    %c1_42 = arith.constant 1 : index
    %c0_43 = arith.constant 0 : index
    %37 = vector.load %arg12[%c1_41, %c1_42, %c0_43] : memref<10x10x128xf32, #tpu.memory_space<vmem>>, vector<8x8x128xf32>
    %38 = vector.shape_cast %37 : vector<8x8x128xf32> to vector<64x128xf32>
    %39 = arith.truncf %38 : vector<64x128xf32> to vector<64x128xbf16>
    %c0_44 = arith.constant 0 : index
    %c512 = arith.constant 512 : index
    %40 = vector.load %arg13[%c0_44, %c512] : memref<64x1152xbf16, #tpu.memory_space<vmem>>, vector<64x128xbf16>
    tpu.vector_store %arg13[%c0_44, %c512], %39 {strides = array<i32>} : memref<64x1152xbf16, #tpu.memory_space<vmem>>, vector<64x128xbf16>,
    %c1_45 = arith.constant 1 : index
    %c2_46 = arith.constant 2 : index
    %c0_47 = arith.constant 0 : index
    %41 = vector.load %arg12[%c1_45, %c2_46, %c0_47] : memref<10x10x128xf32, #tpu.memory_space<vmem>>, vector<8x8x128xf32>
    %42 = vector.shape_cast %41 : vector<8x8x128xf32> to vector<64x128xf32>
    %43 = arith.truncf %42 : vector<64x128xf32> to vector<64x128xbf16>
    %c0_48 = arith.constant 0 : index
    %c640 = arith.constant 640 : index
    %44 = vector.load %arg13[%c0_48, %c640] : memref<64x1152xbf16, #tpu.memory_space<vmem>>, vector<64x128xbf16>
    tpu.vector_store %arg13[%c0_48, %c640], %43 {strides = array<i32>} : memref<64x1152xbf16, #tpu.memory_space<vmem>>, vector<64x128xbf16>,
    %c2_49 = arith.constant 2 : index
    %c0_50 = arith.constant 0 : index
    %c0_51 = arith.constant 0 : index
    %45 = vector.load %arg12[%c2_49, %c0_50, %c0_51] : memref<10x10x128xf32, #tpu.memory_space<vmem>>, vector<8x8x128xf32>
    %46 = vector.shape_cast %45 : vector<8x8x128xf32> to vector<64x128xf32>
    %47 = arith.truncf %46 : vector<64x128xf32> to vector<64x128xbf16>
    %c0_52 = arith.constant 0 : index
    %c768 = arith.constant 768 : index
    %48 = vector.load %arg13[%c0_52, %c768] : memref<64x1152xbf16, #tpu.memory_space<vmem>>, vector<64x128xbf16>
    tpu.vector_store %arg13[%c0_52, %c768], %47 {strides = array<i32>} : memref<64x1152xbf16, #tpu.memory_space<vmem>>, vector<64x128xbf16>,
    %c2_53 = arith.constant 2 : index
    %c1_54 = arith.constant 1 : index
    %c0_55 = arith.constant 0 : index
    %49 = vector.load %arg12[%c2_53, %c1_54, %c0_55] : memref<10x10x128xf32, #tpu.memory_space<vmem>>, vector<8x8x128xf32>
    %50 = vector.shape_cast %49 : vector<8x8x128xf32> to vector<64x128xf32>
    %51 = arith.truncf %50 : vector<64x128xf32> to vector<64x128xbf16>
    %c0_56 = arith.constant 0 : index
    %c896 = arith.constant 896 : index
    %52 = vector.load %arg13[%c0_56, %c896] : memref<64x1152xbf16, #tpu.memory_space<vmem>>, vector<64x128xbf16>
    tpu.vector_store %arg13[%c0_56, %c896], %51 {strides = array<i32>} : memref<64x1152xbf16, #tpu.memory_space<vmem>>, vector<64x128xbf16>,
    %c2_57 = arith.constant 2 : index
    %c2_58 = arith.constant 2 : index
    %c0_59 = arith.constant 0 : index
    %53 = vector.load %arg12[%c2_57, %c2_58, %c0_59] : memref<10x10x128xf32, #tpu.memory_space<vmem>>, vector<8x8x128xf32>
    %54 = vector.shape_cast %53 : vector<8x8x128xf32> to vector<64x128xf32>
    %55 = arith.truncf %54 : vector<64x128xf32> to vector<64x128xbf16>
    %c0_60 = arith.constant 0 : index
    %c1024 = arith.constant 1024 : index
    %56 = vector.load %arg13[%c0_60, %c1024] : memref<64x1152xbf16, #tpu.memory_space<vmem>>, vector<64x128xbf16>
    tpu.vector_store %arg13[%c0_60, %c1024], %55 {strides = array<i32>} : memref<64x1152xbf16, #tpu.memory_space<vmem>>, vector<64x128xbf16>,
    %c0_61 = arith.constant 0 : index
    %c0_62 = arith.constant 0 : index
    %57 = vector.load %arg13[%c0_61, %c0_62] : memref<64x1152xbf16, #tpu.memory_space<vmem>>, vector<64x1152xbf16>
    %c0_63 = arith.constant 0 : index
    %c0_64 = arith.constant 0 : index
    %58 = vector.load %arg5[%c0_63, %c0_64] : memref<1152x128xbf16, #tpu.memory_space<vmem>>, vector<1152x128xbf16>
    %cst_65 = arith.constant dense<0.000000e+00> : vector<64x128xf32>
    %59 = tpu.matmul %57, %58, %cst_65 {dimension_numbers = #tpu.dot_dimension_numbers<[1], [0], [0], [1], [0, 0, 1, 1], [], []>} : vector<64x1152xbf16>, vector<1152x128xbf16>, vector<64x128xf32> -> vector<64x128xf32>
    %c0_66 = arith.constant 0 : index
    %c0_67 = arith.constant 0 : index
    %60 = vector.load %arg6[%c0_66, %c0_67] : memref<1x128xf32, #tpu.memory_space<vmem>>, vector<1x128xf32>
    %61 = vector.broadcast %60 : vector<1x128xf32> to vector<64x128xf32>
    %62 = arith.mulf %59, %61 : vector<64x128xf32>
    %c0_68 = arith.constant 0 : index
    %c0_69 = arith.constant 0 : index
    %63 = vector.load %arg7[%c0_68, %c0_69] : memref<1x128xf32, #tpu.memory_space<vmem>>, vector<1x128xf32>
    %64 = vector.broadcast %63 : vector<1x128xf32> to vector<64x128xf32>
    %65 = arith.addf %62, %64 : vector<64x128xf32>
    %cst_70 = arith.constant 0.000000e+00 : f32
    %66 = vector.broadcast %cst_70 : f32 to vector<64x128xf32>
    %67 = arith.maximumf %65, %66 : vector<64x128xf32>
    %68 = arith.truncf %67 : vector<64x128xf32> to vector<64x128xbf16>
    %c0_71 = arith.constant 0 : index
    %c0_72 = arith.constant 0 : index
    %69 = vector.load %arg8[%c0_71, %c0_72] : memref<128x128xbf16, #tpu.memory_space<vmem>>, vector<128x128xbf16>
    %cst_73 = arith.constant dense<0.000000e+00> : vector<64x128xf32>
    %70 = tpu.matmul %68, %69, %cst_73 {dimension_numbers = #tpu.dot_dimension_numbers<[1], [0], [0], [1], [0, 0, 1, 1], [], []>} : vector<64x128xbf16>, vector<128x128xbf16>, vector<64x128xf32> -> vector<64x128xf32>
    %c0_74 = arith.constant 0 : index
    %c0_75 = arith.constant 0 : index
    %71 = vector.load %arg9[%c0_74, %c0_75] : memref<1x128xf32, #tpu.memory_space<vmem>>, vector<1x128xf32>
    %72 = vector.broadcast %71 : vector<1x128xf32> to vector<64x128xf32>
    %73 = arith.mulf %70, %72 : vector<64x128xf32>
    %c0_76 = arith.constant 0 : index
    %c0_77 = arith.constant 0 : index
    %74 = vector.load %arg10[%c0_76, %c0_77] : memref<1x128xf32, #tpu.memory_space<vmem>>, vector<1x128xf32>
    %75 = vector.broadcast %74 : vector<1x128xf32> to vector<64x128xf32>
    %76 = arith.addf %73, %75 : vector<64x128xf32>
    %c0_78 = arith.constant 0 : index
    %c0_79 = arith.constant 0 : index
    %c0_80 = arith.constant 0 : index
    %c0_81 = arith.constant 0 : index
    %77 = vector.load %arg1[%c0_78, %c0_79, %c0_80, %c0_81] : memref<1x8x8x128xbf16, #tpu.memory_space<vmem>>, vector<1x8x8x128xbf16>
    %78 = vector.shape_cast %77 : vector<1x8x8x128xbf16> to vector<8x8x128xbf16>
    %79 = vector.shape_cast %78 : vector<8x8x128xbf16> to vector<64x128xbf16>
    %80 = arith.extf %79 : vector<64x128xbf16> to vector<64x128xf32>
    %81 = arith.addf %76, %80 : vector<64x128xf32>
    %cst_82 = arith.constant 0.000000e+00 : f32
    %82 = vector.broadcast %cst_82 : f32 to vector<64x128xf32>
    %83 = arith.maximumf %81, %82 : vector<64x128xf32>
    %84 = vector.shape_cast %83 : vector<64x128xf32> to vector<8x8x128xf32>
    %c0_83 = arith.constant 0 : index
    %c0_84 = arith.constant 0 : index
    %c0_85 = arith.constant 0 : index
    %c0_86 = arith.constant 0 : index
    %85 = vector.load %arg11[%c0_83, %c0_84, %c0_85, %c0_86] : memref<1x8x8x128xf32, #tpu.memory_space<vmem>>, vector<1x8x8x128xf32>
    %86 = vector.shape_cast %85 : vector<1x8x8x128xf32> to vector<8x8x128xf32>
    %87 = vector.shape_cast %84 : vector<8x8x128xf32> to vector<1x8x8x128xf32>
    tpu.vector_store %arg11[%c0_83, %c0_84, %c0_85, %c0_86], %87 {strides = array<i32>} : memref<1x8x8x128xf32, #tpu.memory_space<vmem>>, vector<1x8x8x128xf32>,
    return
  }
  func.func @transform_0(%arg0: i32) -> (i32, i32, i32, i32) {
    %c0_i32 = arith.constant 0 : i32
    %c0_i32_0 = arith.constant 0 : i32
    %c0_i32_1 = arith.constant 0 : i32
    %c0_i32_2 = arith.constant 0 : i32
    return %arg0, %c0_i32, %c0_i32_0, %c0_i32_1 : i32, i32, i32, i32
  }
  func.func @transform_1(%arg0: i32) -> (i32, i32) {
    %c0_i32 = arith.constant 0 : i32
    %c0_i32_0 = arith.constant 0 : i32
    %c0_i32_1 = arith.constant 0 : i32
    return %c0_i32, %c0_i32_0 : i32, i32
  }
  func.func @transform_2(%arg0: i32) -> (i32, i32) {
    %c0_i32 = arith.constant 0 : i32
    %c0_i32_0 = arith.constant 0 : i32
    %c0_i32_1 = arith.constant 0 : i32
    return %c0_i32, %c0_i32_0 : i32, i32
  }
  func.func @transform_3(%arg0: i32) -> (i32, i32) {
    %c0_i32 = arith.constant 0 : i32
    %c0_i32_0 = arith.constant 0 : i32
    %c0_i32_1 = arith.constant 0 : i32
    return %c0_i32, %c0_i32_0 : i32, i32
  }
  func.func @transform_4(%arg0: i32) -> (i32, i32) {
    %c0_i32 = arith.constant 0 : i32
    %c0_i32_0 = arith.constant 0 : i32
    %c0_i32_1 = arith.constant 0 : i32
    return %c0_i32, %c0_i32_0 : i32, i32
  }
  func.func @transform_5(%arg0: i32) -> (i32, i32) {
    %c0_i32 = arith.constant 0 : i32
    %c0_i32_0 = arith.constant 0 : i32
    %c0_i32_1 = arith.constant 0 : i32
    return %c0_i32, %c0_i32_0 : i32, i32
  }
  func.func @transform_6(%arg0: i32) -> (i32, i32) {
    %c0_i32 = arith.constant 0 : i32
    %c0_i32_0 = arith.constant 0 : i32
    %c0_i32_1 = arith.constant 0 : i32
    return %c0_i32, %c0_i32_0 : i32, i32
  }
  func.func @transform_7(%arg0: i32) -> (i32, i32) {
    %c0_i32 = arith.constant 0 : i32
    %c0_i32_0 = arith.constant 0 : i32
    %c0_i32_1 = arith.constant 0 : i32
    return %c0_i32, %c0_i32_0 : i32, i32
  }
  func.func @transform_8(%arg0: i32) -> (i32, i32) {
    %c0_i32 = arith.constant 0 : i32
    %c0_i32_0 = arith.constant 0 : i32
    %c0_i32_1 = arith.constant 0 : i32
    return %c0_i32, %c0_i32_0 : i32, i32
  }
  func.func @transform_9(%arg0: i32) -> (i32, i32) {
    %c0_i32 = arith.constant 0 : i32
    %c0_i32_0 = arith.constant 0 : i32
    %c0_i32_1 = arith.constant 0 : i32
    return %c0_i32, %c0_i32_0 : i32, i32
  }
  func.func @transform_10(%arg0: i32) -> (i32, i32, i32, i32) {
    %c0_i32 = arith.constant 0 : i32
    %c0_i32_0 = arith.constant 0 : i32
    %c0_i32_1 = arith.constant 0 : i32
    %c0_i32_2 = arith.constant 0 : i32
    return %arg0, %c0_i32, %c0_i32_0, %c0_i32_1 : i32, i32, i32, i32
  }
}

</mosaic_0001>

<llo_original>
// kernel: tpu_custom_call.1
$region0: #{tpu_custom_call.1}
  #allocation0 [shape = 'u32[]', space=smem, size = 0x4, offset = 0x4, fixed_abs, tag = 'smem constant byte address 0x4 - core index']
  #allocation1 [shape = 'u32[144,128]{1,0:T(1,128)}', space=vmem, size = 0x12000, scoped, tag = 'internal scratch']
  #allocation2 [shape = 'f32[10,10,128]{2,1,0:T(8,128)}', space=vmem, size = 0x14000, scoped, tag = 'scratch operand']
  #allocation3 [shape = 'bf16[64,1152]{1,0:T(16,128)(2,1)}', space=vmem, size = 0x24000, scoped, tag = 'scratch operand']
  %s0 = inlined_call_operand.hbm [shape: bf16[2,8,8,128], index: 0, kind: input, shape index: {}]
  %s1 = inlined_call_operand.hbm [shape: bf16[128,128], index: 1, kind: input, shape index: {}]
  %s2 = inlined_call_operand.vmem [shape: f32[1,128], index: 2, kind: input, shape index: {}]
  %s3 = inlined_call_operand.vmem [shape: f32[1,128], index: 3, kind: input, shape index: {}]
  %s4 = inlined_call_operand.hbm [shape: bf16[1152,128], index: 4, kind: input, shape index: {}]
  %s5 = inlined_call_operand.vmem [shape: f32[1,128], index: 5, kind: input, shape index: {}]
  %s6 = inlined_call_operand.vmem [shape: f32[1,128], index: 6, kind: input, shape index: {}]
  %s7 = inlined_call_operand.hbm [shape: bf16[128,128], index: 7, kind: input, shape index: {}]
  %s8 = inlined_call_operand.vmem [shape: f32[1,128], index: 8, kind: input, shape index: {}]
  %s9 = inlined_call_operand.vmem [shape: f32[1,128], index: 9, kind: input, shape index: {}]
  %s10 = inlined_call_operand.hbm [shape: f32[2,8,8,128], index: 10, kind: output, shape index: {}]
  %s11 = sld [smem:[#allocation0]]
  $region89: #{tpu_custom_call.1} parent=0
    _
  %s13 = ssub.s32 1, %s11
  %s14 = scalar_select 0, %s13, %s11
  $region1: #{tpu_custom_call.1} parent=0
    #allocation4 [shape = 'u8[32768]{0}', space=vmem, size = 0x8000, scoped, tag = 'input window, operand 0']
    #allocation5 [shape = 's32[2]{0}', space=sflag, size = 0x8, scoped, tag = 'scoped memory for tpu_custom_call.1']
    #allocation6 [shape = 's32[2]{0}', space=sflag, size = 0x8, scoped, tag = 'scoped memory for tpu_custom_call.1']
    #allocation7 [shape = 'u8[32768]{0}', space=vmem, size = 0x8000, scoped, tag = 'input window, operand 1, single buffered']
    #allocation8 [shape = 's32[1]{0}', space=sflag, size = 0x4, scoped, tag = 'scoped memory for tpu_custom_call.1']
    #allocation9 [shape = 'u8[294912]{0}', space=vmem, size = 0x48000, scoped, tag = 'input window, operand 4, single buffered']
    #allocation10 [shape = 'u8[32768]{0}', space=vmem, size = 0x8000, scoped, tag = 'input window, operand 7, single buffered']
    #allocation11 [shape = 's32[1]{0}', space=sflag, size = 0x4, scoped, tag = 'scoped memory for tpu_custom_call.1']
    #allocation12 [shape = 'u8[65536]{0}', space=vmem, size = 0x10000, scoped, tag = 'output window, operand 0']
    %15 = vsyncpa [#allocation5], 0
    %s16 = scalar_lea.sflag [#allocation5], 1
    %17 = vsyncpa %s16, 0
    %18 = vsyncpa [#allocation8], 0
    %19 = vsyncpa [#allocation11], 0
    %20 = vsyncpa [#allocation6], 0
    %s21 = scalar_lea.sflag [#allocation6], 1
    %22 = vsyncpa %s21, 0
    loop: start=0, step=1, limit=4
    $region2: #{tpu_custom_call.1} parent=1 // loop_pre_header
      _
    $region3: #{tpu_custom_call.1} parent=1 // loop_header
      %s24 = sphi 0, %s28
      %p25 = scmp.ge.s32.totalorder %s24, 4
      %s34 = sphi 0, %s36
      %s37 = sphi 0, %s34
      %s38 = sphi 0, %s37
      %s54 = sphi 0, %s38
      %s58 = sphi 0, %s58
      %s60 = sphi 0, %s58
      %s61 = sphi 0, %s60
      %s75 = sphi 0, %s61
      %s79 = sphi 0, %s79
      %s81 = sphi 0, %s79
      %s82 = sphi 0, %s81
      %s96 = sphi 0, %s82
      %s100 = sphi 0, %s100
      %s102 = sphi 0, %s100
      %s103 = sphi 0, %s102
      %s117 = sphi 0, %s103
      %s121 = sphi 0, %s121
      %s123 = sphi 0, %s121
      %s124 = sphi 0, %s123
      %s138 = sphi 0, %s124
      %s142 = sphi 0, %s142
      %s144 = sphi 0, %s142
      %s145 = sphi 0, %s144
      %s159 = sphi 0, %s145
      %s163 = sphi 0, %s163
      %s165 = sphi 0, %s163
      %s166 = sphi 0, %s165
      %s180 = sphi 0, %s166
      %s184 = sphi 0, %s184
      %s186 = sphi 0, %s184
      %s187 = sphi 0, %s186
      %s201 = sphi 0, %s187
      %s205 = sphi 0, %s205
      %s207 = sphi 0, %s205
      %s208 = sphi 0, %s207
      %s222 = sphi 0, %s208
      %s226 = sphi 0, %s226
      %s228 = sphi 0, %s226
      %s229 = sphi 0, %s228
      %s243 = sphi 0, %s229
      %s249 = sphi 0, %s251
      %s252 = sphi 0, %s249
      %s253 = sphi 0, %s252
      %s269 = sphi 0, %s253
    $region4: #{tpu_custom_call.1} parent=1 // loop_header_branch
      %27 = sbr.rel (%p25) target = $region8
    $region5: #{tpu_custom_call.1} parent=1 // loop_body
      %s29 = ssub.s32 %s24, 1
      %s30 = ssub.s32 %s24, 2
      %s31 = sadd.s32 %s24, 1
      %s32 = ssub.s32 %s24, %s31
      %p33 = scmp.eq.s32.totalorder %s32, 0
      %s35 = sadd.s32 %s34, 1
      %s36 = scalar_select %p33, %s34, %s35
      %p39 = pneg %p33
      %p40 = scmp.eq.s32.totalorder %s24, 1
      %p41 = por %p39, %p40
      %p42 = scmp.ne.s32.totalorder %s34, %s37
      %p43 = scmp.eq.s32.totalorder %s24, 0
      %p44 = por %p42, %p43
      %p45 = scmp.ne.s32.totalorder %s34, %s37
      %p46 = scmp.eq.s32.totalorder %s29, 1
      %p47 = por %p45, %p46
      %p48 = scmp.ne.s32.totalorder %s37, %s38
      %p49 = scmp.eq.s32.totalorder %s29, 0
      %p50 = por %p48, %p49
      %p51 = scmp.ne.s32.totalorder %s37, %s38
      %p52 = scmp.eq.s32.totalorder %s30, 1
      %p53 = por %p51, %p52
      %p55 = scmp.ne.s32.totalorder %s38, %s54
      %p56 = scmp.eq.s32.totalorder %s30, 0
      %p57 = por %p55, %p56
      %s59 = sadd.s32 %s58, 1
      %p62 = scmp.eq.s32.totalorder %s24, 1
      %p63 = scmp.ne.s32.totalorder %s58, %s60
      %p64 = scmp.eq.s32.totalorder %s24, 0
      %p65 = por %p63, %p64
      %p66 = scmp.ne.s32.totalorder %s58, %s60
      %p67 = scmp.eq.s32.totalorder %s29, 1
      %p68 = por %p66, %p67
      %p69 = scmp.ne.s32.totalorder %s60, %s61
      %p70 = scmp.eq.s32.totalorder %s29, 0
      %p71 = por %p69, %p70
      %p72 = scmp.ne.s32.totalorder %s60, %s61
      %p73 = scmp.eq.s32.totalorder %s30, 1
      %p74 = por %p72, %p73
      %p76 = scmp.ne.s32.totalorder %s61, %s75
      %p77 = scmp.eq.s32.totalorder %s30, 0
      %p78 = por %p76, %p77
      %s80 = sadd.s32 %s79, 1
      %p83 = scmp.eq.s32.totalorder %s24, 1
      %p84 = scmp.ne.s32.totalorder %s79, %s81
      %p85 = scmp.eq.s32.totalorder %s24, 0
      %p86 = por %p84, %p85
      %p87 = scmp.ne.s32.totalorder %s79, %s81
      %p88 = scmp.eq.s32.totalorder %s29, 1
      %p89 = por %p87, %p88
      %p90 = scmp.ne.s32.totalorder %s81, %s82
      %p91 = scmp.eq.s32.totalorder %s29, 0
      %p92 = por %p90, %p91
      %p93 = scmp.ne.s32.totalorder %s81, %s82
      %p94 = scmp.eq.s32.totalorder %s30, 1
      %p95 = por %p93, %p94
      %p97 = scmp.ne.s32.totalorder %s82, %s96
      %p98 = scmp.eq.s32.totalorder %s30, 0
      %p99 = por %p97, %p98
      %s101 = sadd.s32 %s100, 1
      %p104 = scmp.eq.s32.totalorder %s24, 1
      %p105 = scmp.ne.s32.totalorder %s100, %s102
      %p106 = scmp.eq.s32.totalorder %s24, 0
      %p107 = por %p105, %p106
      %p108 = scmp.ne.s32.totalorder %s100, %s102
      %p109 = scmp.eq.s32.totalorder %s29, 1
      %p110 = por %p108, %p109
      %p111 = scmp.ne.s32.totalorder %s102, %s103
      %p112 = scmp.eq.s32.totalorder %s29, 0
      %p113 = por %p111, %p112
      %p114 = scmp.ne.s32.totalorder %s102, %s103
      %p115 = scmp.eq.s32.totalorder %s30, 1
      %p116 = por %p114, %p115
      %p118 = scmp.ne.s32.totalorder %s103, %s117
      %p119 = scmp.eq.s32.totalorder %s30, 0
      %p120 = por %p118, %p119
      %s122 = sadd.s32 %s121, 1
      %p125 = scmp.eq.s32.totalorder %s24, 1
      %p126 = scmp.ne.s32.totalorder %s121, %s123
      %p127 = scmp.eq.s32.totalorder %s24, 0
      %p128 = por %p126, %p127
      %p129 = scmp.ne.s32.totalorder %s121, %s123
      %p130 = scmp.eq.s32.totalorder %s29, 1
      %p131 = por %p129, %p130
      %p132 = scmp.ne.s32.totalorder %s123, %s124
      %p133 = scmp.eq.s32.totalorder %s29, 0
      %p134 = por %p132, %p133
      %p135 = scmp.ne.s32.totalorder %s123, %s124
      %p136 = scmp.eq.s32.totalorder %s30, 1
      %p137 = por %p135, %p136
      %p139 = scmp.ne.s32.totalorder %s124, %s138
      %p140 = scmp.eq.s32.totalorder %s30, 0
      %p141 = por %p139, %p140
      %s143 = sadd.s32 %s142, 1
      %p146 = scmp.eq.s32.totalorder %s24, 1
      %p147 = scmp.ne.s32.totalorder %s142, %s144
      %p148 = scmp.eq.s32.totalorder %s24, 0
      %p149 = por %p147, %p148
      %p150 = scmp.ne.s32.totalorder %s142, %s144
      %p151 = scmp.eq.s32.totalorder %s29, 1
      %p152 = por %p150, %p151
      %p153 = scmp.ne.s32.totalorder %s144, %s145
      %p154 = scmp.eq.s32.totalorder %s29, 0
      %p155 = por %p153, %p154
      %p156 = scmp.ne.s32.totalorder %s144, %s145
      %p157 = scmp.eq.s32.totalorder %s30, 1
      %p158 = por %p156, %p157
      %p160 = scmp.ne.s32.totalorder %s145, %s159
      %p161 = scmp.eq.s32.totalorder %s30, 0
      %p162 = por %p160, %p161
      %s164 = sadd.s32 %s163, 1
      %p167 = scmp.eq.s32.totalorder %s24, 1
      %p168 = scmp.ne.s32.totalorder %s163, %s165
      %p169 = scmp.eq.s32.totalorder %s24, 0
      %p170 = por %p168, %p169
      %p171 = scmp.ne.s32.totalorder %s163, %s165
      %p172 = scmp.eq.s32.totalorder %s29, 1
      %p173 = por %p171, %p172
      %p174 = scmp.ne.s32.totalorder %s165, %s166
      %p175 = scmp.eq.s32.totalorder %s29, 0
      %p176 = por %p174, %p175
      %p177 = scmp.ne.s32.totalorder %s165, %s166
      %p178 = scmp.eq.s32.totalorder %s30, 1
      %p179 = por %p177, %p178
      %p181 = scmp.ne.s32.totalorder %s166, %s180
      %p182 = scmp.eq.s32.totalorder %s30, 0
      %p183 = por %p181, %p182
      %s185 = sadd.s32 %s184, 1
      %p188 = scmp.eq.s32.totalorder %s24, 1
      %p189 = scmp.ne.s32.totalorder %s184, %s186
      %p190 = scmp.eq.s32.totalorder %s24, 0
      %p191 = por %p189, %p190
      %p192 = scmp.ne.s32.totalorder %s184, %s186
      %p193 = scmp.eq.s32.totalorder %s29, 1
      %p194 = por %p192, %p193
      %p195 = scmp.ne.s32.totalorder %s186, %s187
      %p196 = scmp.eq.s32.totalorder %s29, 0
      %p197 = por %p195, %p196
      %p198 = scmp.ne.s32.totalorder %s186, %s187
      %p199 = scmp.eq.s32.totalorder %s30, 1
      %p200 = por %p198, %p199
      %p202 = scmp.ne.s32.totalorder %s187, %s201
      %p203 = scmp.eq.s32.totalorder %s30, 0
      %p204 = por %p202, %p203
      %s206 = sadd.s32 %s205, 1
      %p209 = scmp.eq.s32.totalorder %s24, 1
      %p210 = scmp.ne.s32.totalorder %s205, %s207
      %p211 = scmp.eq.s32.totalorder %s24, 0
      %p212 = por %p210, %p211
      %p213 = scmp.ne.s32.totalorder %s205, %s207
      %p214 = scmp.eq.s32.totalorder %s29, 1
      %p215 = por %p213, %p214
      %p216 = scmp.ne.s32.totalorder %s207, %s208
      %p217 = scmp.eq.s32.totalorder %s29, 0
      %p218 = por %p216, %p217
      %p219 = scmp.ne.s32.totalorder %s207, %s208
      %p220 = scmp.eq.s32.totalorder %s30, 1
      %p221 = por %p219, %p220
      %p223 = scmp.ne.s32.totalorder %s208, %s222
      %p224 = scmp.eq.s32.totalorder %s30, 0
      %p225 = por %p223, %p224
      %s227 = sadd.s32 %s226, 1
      %p230 = scmp.eq.s32.totalorder %s24, 1
      %p231 = scmp.ne.s32.totalorder %s226, %s228
      %p232 = scmp.eq.s32.totalorder %s24, 0
      %p233 = por %p231, %p232
      %p234 = scmp.ne.s32.totalorder %s226, %s228
      %p235 = scmp.eq.s32.totalorder %s29, 1
      %p236 = por %p234, %p235
      %p237 = scmp.ne.s32.totalorder %s228, %s229
      %p238 = scmp.eq.s32.totalorder %s29, 0
      %p239 = por %p237, %p238
      %p240 = scmp.ne.s32.totalorder %s228, %s229
      %p241 = scmp.eq.s32.totalorder %s30, 1
      %p242 = por %p240, %p241
      %p244 = scmp.ne.s32.totalorder %s229, %s243
      %p245 = scmp.eq.s32.totalorder %s30, 0
      %p246 = por %p244, %p245
      %s247 = ssub.s32 %s24, %s31
      %p248 = scmp.eq.s32.totalorder %s247, 0
      %s250 = sadd.s32 %s249, 1
      %s251 = scalar_select %p248, %s249, %s250
      %p254 = pneg %p248
      %p255 = scmp.eq.s32.totalorder %s24, 1
      %p256 = por %p254, %p255
      %p257 = scmp.ne.s32.totalorder %s249, %s252
      %p258 = scmp.eq.s32.totalorder %s24, 0
      %p259 = por %p257, %p258
      %p260 = scmp.ne.s32.totalorder %s249, %s252
      %p261 = scmp.eq.s32.totalorder %s29, 1
      %p262 = por %p260, %p261
      %p263 = scmp.ne.s32.totalorder %s252, %s253
      %p264 = scmp.eq.s32.totalorder %s29, 0
      %p265 = por %p263, %p264
      %p266 = scmp.ne.s32.totalorder %s252, %s253
      %p267 = scmp.eq.s32.totalorder %s30, 1
      %p268 = por %p266, %p267
      %p270 = scmp.ne.s32.totalorder %s253, %s269
      %p271 = scmp.eq.s32.totalorder %s30, 0
      %p272 = por %p270, %p271
      %p273 = scmp.le.s32.totalorder 1, %s24
      %p274 = scmp.lt.s32.totalorder %s24, 3
      %p275 = pnand %p273, %p274
      %p276 = pneg %p275
      // Predicated region
      $region9: #{tpu_custom_call.1} parent=5 // pred_check
        _
      $region10: #{tpu_custom_call.1} parent=5 // pred_check_branch
        %278 = sbr.rel (%p275) target = $region12
      $region11: #{tpu_custom_call.1} parent=5 // pred_region
        %s279 = ssub.s32 %s24, 1
        // Predicated region
        $region13: #{tpu_custom_call.1} parent=11 // pred_check
          %p280 = pneg %p71
        $region14: #{tpu_custom_call.1} parent=11 // pred_check_branch
          %282 = sbr.rel (%p280) target = $region16
        $region15: #{tpu_custom_call.1} parent=11 // pred_region
          %s284 = ssub.s32 1024, 1024
          %285 = vsyncadd [#allocation8], %s284
          %s286 = sshll.u32 [#allocation7], 4
          %s287 = int_to_ptr.vmem [resolvable:$true] %s286
          %292 = dma.hbm_to_vmem [thread:$0]  %s1, 1024, %s287, [#allocation8], 64, 64, 4
        $region16: #{tpu_custom_call.1} parent=11 // pred_fallthru
          _
        // Predicated region
        $region17: #{tpu_custom_call.1} parent=11 // pred_check
          %p293 = pneg %p92
        $region18: #{tpu_custom_call.1} parent=11 // pred_check_branch
          %295 = sbr.rel (%p293) target = $region20
        $region19: #{tpu_custom_call.1} parent=11 // pred_region
          _
        $region20: #{tpu_custom_call.1} parent=11 // pred_fallthru
          _
        // Predicated region
        $region21: #{tpu_custom_call.1} parent=11 // pred_check
          %p296 = pneg %p113
        $region22: #{tpu_custom_call.1} parent=11 // pred_check_branch
          %298 = sbr.rel (%p296) target = $region24
        $region23: #{tpu_custom_call.1} parent=11 // pred_region
          _
        $region24: #{tpu_custom_call.1} parent=11 // pred_fallthru
          _
        // Predicated region
        $region25: #{tpu_custom_call.1} parent=11 // pred_check
          %p299 = pneg %p134
        $region26: #{tpu_custom_call.1} parent=11 // pred_check_branch
          %301 = sbr.rel (%p299) target = $region28
        $region27: #{tpu_custom_call.1} parent=11 // pred_region
          %s303 = ssub.s32 9216, 9216
          %304 = vsyncadd [#allocation8], %s303
          %s305 = sshll.u32 [#allocation9], 4
          %s306 = int_to_ptr.vmem [resolvable:$true] %s305
          %311 = dma.hbm_to_vmem [thread:$0]  %s4, 9216, %s306, [#allocation8], 64, 64, 4
        $region28: #{tpu_custom_call.1} parent=11 // pred_fallthru
          _
        // Predicated region
        $region29: #{tpu_custom_call.1} parent=11 // pred_check
          %p312 = pneg %p155
        $region30: #{tpu_custom_call.1} parent=11 // pred_check_branch
          %314 = sbr.rel (%p312) target = $region32
        $region31: #{tpu_custom_call.1} parent=11 // pred_region
          _
        $region32: #{tpu_custom_call.1} parent=11 // pred_fallthru
          _
        // Predicated region
        $region33: #{tpu_custom_call.1} parent=11 // pred_check
          %p315 = pneg %p176
        $region34: #{tpu_custom_call.1} parent=11 // pred_check_branch
          %317 = sbr.rel (%p315) target = $region36
        $region35: #{tpu_custom_call.1} parent=11 // pred_region
          _
        $region36: #{tpu_custom_call.1} parent=11 // pred_fallthru
          _
        // Predicated region
        $region37: #{tpu_custom_call.1} parent=11 // pred_check
          %p318 = pneg %p197
        $region38: #{tpu_custom_call.1} parent=11 // pred_check_branch
          %320 = sbr.rel (%p318) target = $region40
        $region39: #{tpu_custom_call.1} parent=11 // pred_region
          %s322 = ssub.s32 1024, 1024
          %323 = vsyncadd [#allocation11], %s322
          %s324 = sshll.u32 [#allocation10], 4
          %s325 = int_to_ptr.vmem [resolvable:$true] %s324
          %330 = dma.hbm_to_vmem [thread:$0]  %s7, 1024, %s325, [#allocation11], 64, 64, 4
        $region40: #{tpu_custom_call.1} parent=11 // pred_fallthru
          _
        // Predicated region
        $region41: #{tpu_custom_call.1} parent=11 // pred_check
          %p331 = pneg %p218
        $region42: #{tpu_custom_call.1} parent=11 // pred_check_branch
          %333 = sbr.rel (%p331) target = $region44
        $region43: #{tpu_custom_call.1} parent=11 // pred_region
          _
        $region44: #{tpu_custom_call.1} parent=11 // pred_fallthru
          _
        // Predicated region
        $region45: #{tpu_custom_call.1} parent=11 // pred_check
          %p334 = pneg %p239
        $region46: #{tpu_custom_call.1} parent=11 // pred_check_branch
          %336 = sbr.rel (%p334) target = $region48
        $region47: #{tpu_custom_call.1} parent=11 // pred_region
          _
        $region48: #{tpu_custom_call.1} parent=11 // pred_fallthru
          _
      $region12: #{tpu_custom_call.1} parent=5 // pred_fallthru
        _
      %p337 = scmp.lt.s32.totalorder %s24, 2
      // Predicated region
      $region49: #{tpu_custom_call.1} parent=5 // pred_check
        %p338 = pneg %p337
      $region50: #{tpu_custom_call.1} parent=5 // pred_check_branch
        %340 = sbr.rel (%p338) target = $region52
      $region51: #{tpu_custom_call.1} parent=5 // pred_region
        // Predicated region
        $region53: #{tpu_custom_call.1} parent=51 // pred_check
          %p341 = pneg %p44
        $region54: #{tpu_custom_call.1} parent=51 // pred_check_branch
          %343 = sbr.rel (%p341) target = $region56
        $region55: #{tpu_custom_call.1} parent=51 // pred_region
          %s344 = sand.u32 %s34, 1
          %s345 = scalar_lea.sflag [#allocation5], %s344
          %s346 = sand.u32 %s34, 1
          %s347 = smul.addr %s346, 32
          %s348 = scalar_lea.vmem [#allocation4], %s347
          %s350 = ssub.s32 512, 512
          %351 = vsyncadd %s345, %s350
          %s352 = smul.addr %s24, 8
          %s353 = smul.addr %s352, 64
          %s354 = scalar_lea.hbm %s0, %s353
          %s355 = sshll.u32 %s348, 4
          %s356 = int_to_ptr.vmem [resolvable:$true] %s355
          %361 = dma.hbm_to_vmem [thread:$0]  %s354, 512, %s356, %s345, 64, 64, 4
        $region56: #{tpu_custom_call.1} parent=51 // pred_fallthru
          _
      $region52: #{tpu_custom_call.1} parent=5 // pred_fallthru
        _
      %p362 = scmp.le.s32.totalorder 1, %s24
      %p363 = scmp.lt.s32.totalorder %s24, 3
      %p364 = pnand %p362, %p363
      %p365 = pneg %p364
      // Predicated region
      $region57: #{tpu_custom_call.1} parent=5 // pred_check
        _
      $region58: #{tpu_custom_call.1} parent=5 // pred_check_branch
        %367 = sbr.rel (%p364) target = $region60
      $region59: #{tpu_custom_call.1} parent=5 // pred_region
        %s368 = ssub.s32 %s24, 1
        %s369 = sand.u32 %s37, 1
        %s370 = scalar_lea.sflag [#allocation5], %s369
        %s371 = sand.u32 %s37, 1
        %s372 = smul.addr %s371, 32
        %s373 = scalar_lea.vmem [#allocation4], %s372
        // Predicated region
        $region61: #{tpu_custom_call.1} parent=59 // pred_check
          %p374 = pneg %p50
        $region62: #{tpu_custom_call.1} parent=59 // pred_check_branch
          %376 = sbr.rel (%p374) target = $region64
        $region63: #{tpu_custom_call.1} parent=59 // pred_region
          %377 = dma.done %s370, 512
        $region64: #{tpu_custom_call.1} parent=59 // pred_fallthru
          _
        // Predicated region
        $region65: #{tpu_custom_call.1} parent=59 // pred_check
          %p378 = pneg %p71
        $region66: #{tpu_custom_call.1} parent=59 // pred_check_branch
          %380 = sbr.rel (%p378) target = $region68
        $region67: #{tpu_custom_call.1} parent=59 // pred_region
          %381 = dma.done [#allocation8], 1024
        $region68: #{tpu_custom_call.1} parent=59 // pred_fallthru
          _
        // Predicated region
        $region69: #{tpu_custom_call.1} parent=59 // pred_check
          %p382 = pneg %p134
        $region70: #{tpu_custom_call.1} parent=59 // pred_check_branch
          %384 = sbr.rel (%p382) target = $region72
        $region71: #{tpu_custom_call.1} parent=59 // pred_region
          %385 = dma.done [#allocation8], 9216
        $region72: #{tpu_custom_call.1} parent=59 // pred_fallthru
          _
        // Predicated region
        $region73: #{tpu_custom_call.1} parent=59 // pred_check
          %p386 = pneg %p197
        $region74: #{tpu_custom_call.1} parent=59 // pred_check_branch
          %388 = sbr.rel (%p386) target = $region76
        $region75: #{tpu_custom_call.1} parent=59 // pred_region
          %389 = dma.done [#allocation11], 1024
        $region76: #{tpu_custom_call.1} parent=59 // pred_fallthru
          _
        %s390 = sand.u32 %s37, 1
        %s391 = scalar_lea.sflag [#allocation5], %s390
        %s392 = sand.u32 %s37, 1
        %s393 = smul.addr %s392, 32
        %s394 = scalar_lea.vmem [#allocation4], %s393
        %p395 = pneg %p50
        %p396 = pneg %p47
        %p397 = pneg %p71
        %p398 = pneg %p68
        %p399 = pneg %p92
        %p400 = pneg %p89
        %p401 = pneg %p113
        %p402 = pneg %p110
        %p403 = pneg %p134
        %p404 = pneg %p131
        %p405 = pneg %p155
        %p406 = pneg %p152
        %p407 = pneg %p176
        %p408 = pneg %p173
        %p409 = pneg %p197
        %p410 = pneg %p194
        %p411 = pneg %p218
        %p412 = pneg %p215
        %p413 = pneg %p239
        %p414 = pneg %p236
        %p415 = pneg %p265
        %p416 = pneg %p262
        %s417 = sand.u32 %s252, 1
        %s418 = scalar_lea.sflag [#allocation6], %s417
        %s419 = sand.u32 %s252, 1
        %s420 = smul.addr %s419, 64
        %s421 = scalar_lea.vmem [#allocation12], %s420
        %v423 = vld [vmem:[%s373] sm:$0xf]
        %v424 = vld [vmem:[%s373 + $0x4] sm:$0xf]
        %v425 = vld [vmem:[%s373 + $0x8] sm:$0xf]
        %v426 = vld [vmem:[%s373 + $0xc] sm:$0xf]
        %v427 = vld [vmem:[%s373 + $0x10] sm:$0xf]
        %v428 = vld [vmem:[%s373 + $0x14] sm:$0xf]
        %v429 = vld [vmem:[%s373 + $0x18] sm:$0xf]
        %v430 = vld [vmem:[%s373 + $0x1c] sm:$0xf]
        %v431 = vld [vmem:[#allocation7] sm:$0xf]
        %v432 = vld [vmem:[#allocation7 + $0x4] sm:$0xf]
        %v433 = vld [vmem:[#allocation7 + $0x8] sm:$0xf]
        %v434 = vld [vmem:[#allocation7 + $0xc] sm:$0xf]
        %v435 = vld [vmem:[#allocation7 + $0x10] sm:$0xf]
        %v436 = vld [vmem:[#allocation7 + $0x14] sm:$0xf]
        %v437 = vld [vmem:[#allocation7 + $0x18] sm:$0xf]
        %v438 = vld [vmem:[#allocation7 + $0x1c] sm:$0xf]
        %v439 = vld [vmem:[#allocation7 + $0x20] sm:$0xf]
        %v440 = vld [vmem:[#allocation7 + $0x24] sm:$0xf]
        %v441 = vld [vmem:[#allocation7 + $0x28] sm:$0xf]
        %v442 = vld [vmem:[#allocation7 + $0x2c] sm:$0xf]
        %v443 = vld [vmem:[#allocation7 + $0x30] sm:$0xf]
        %v444 = vld [vmem:[#allocation7 + $0x34] sm:$0xf]
        %v445 = vld [vmem:[#allocation7 + $0x38] sm:$0xf]
        %v446 = vld [vmem:[#allocation7 + $0x3c] sm:$0xf]
        %v455 = vunpack.c.l.b16 %v423
        %v456 = vunpack.c.l.b16 %v424
        %v457 = vunpack.c.l.b16 %v425
        %v458 = vunpack.c.l.b16 %v426
        %v459 = vunpack.c.l.b16 %v427
        %v460 = vunpack.c.l.b16 %v428
        %v461 = vunpack.c.l.b16 %v429
        %v462 = vunpack.c.l.b16 %v430
        %v463 = vpack.c.b16 %v456, %v455
        %v464 = vpack.c.b16 %v458, %v457
        %v465 = vpack.c.b16 %v460, %v459
        %v466 = vpack.c.b16 %v462, %v461
        %v487 = vunpack.c.l.b16 %v431
        %v488 = vunpack.c.l.b16 %v432
        %v489 = vunpack.c.l.b16 %v433
        %v490 = vunpack.c.l.b16 %v434
        %v491 = vunpack.c.l.b16 %v435
        %v492 = vunpack.c.l.b16 %v436
        %v493 = vunpack.c.l.b16 %v437
        %v494 = vunpack.c.l.b16 %v438
        %v495 = vunpack.c.l.b16 %v439
        %v496 = vunpack.c.l.b16 %v440
        %v497 = vunpack.c.l.b16 %v441
        %v498 = vunpack.c.l.b16 %v442
        %v499 = vunpack.c.l.b16 %v443
        %v500 = vunpack.c.l.b16 %v444
        %v501 = vunpack.c.l.b16 %v445
        %v502 = vunpack.c.l.b16 %v446
        %v503 = vpack.c.b16 %v488, %v487
        %v504 = vpack.c.b16 %v490, %v489
        %v505 = vpack.c.b16 %v492, %v491
        %v506 = vpack.c.b16 %v494, %v493
        %v507 = vpack.c.b16 %v496, %v495
        %v508 = vpack.c.b16 %v498, %v497
        %v509 = vpack.c.b16 %v500, %v499
        %v510 = vpack.c.b16 %v502, %v501
        %519 = vmatprep.subr.bf16.mxu0 0
        %520 = vmatpush1.bf16.msra.mxu0 %v503
        %521 = vmatprep.subr.bf16.mxu0 0
        %522 = vmatpush1.bf16.msra.mxu0 %v504
        %523 = vmatprep.subr.bf16.mxu0 0
        %524 = vmatpush1.bf16.msra.mxu0 %v505
        %525 = vmatprep.subr.bf16.mxu0 0
        %526 = vmatpush1.bf16.msra.mxu0 %v506
        %527 = vmatprep.subr.bf16.mxu0 0
        %528 = vmatpush1.bf16.msra.mxu0 %v507
        %529 = vmatprep.subr.bf16.mxu0 0
        %530 = vmatpush1.bf16.msra.mxu0 %v508
        %531 = vmatprep.subr.bf16.mxu0 0
        %532 = vmatpush1.bf16.msra.mxu0 %v509
        %533 = vmatprep.subr.bf16.mxu0 0
        %534 = vmatpush1.bf16.msra.mxu0 %v510
        %535 = vmatprep.subr.bf16.mxu0 0
        %536 = vmatpush1.bf16.msra.mxu0 0
        %537 = vmatprep.subr.bf16.mxu0 0
        %538 = vmatpush1.bf16.msra.mxu0 0
        %539 = vmatprep.subr.bf16.mxu0 0
        %540 = vmatpush1.bf16.msra.mxu0 0
        %541 = vmatprep.subr.bf16.mxu0 0
        %542 = vmatpush1.bf16.msra.mxu0 0
        %543 = vmatprep.subr.bf16.mxu0 0
        %544 = vmatpush1.bf16.msra.mxu0 0
        %545 = vmatprep.subr.bf16.mxu0 0
        %546 = vmatpush1.bf16.msra.mxu0 0
        %547 = vmatprep.subr.bf16.mxu0 0
        %548 = vmatpush1.bf16.msra.mxu0 0
        %549 = vmatprep.subr.bf16.mxu0 0
        %550 = vmatpush1.bf16.msra.mxu0 0
        %551 = vmatprep.mubr.bf16.mxu0 0
        %552 = vmatmul.mubr.bf16.gmra.mrb[0].mxu0 %v463
        %v553 = vpop.f32.mrb[0].mxu0
        %v554 = vadd.f32 0.0, %v553
        %v555 = vpop.f32.mrb[0].mxu0
        %v556 = vpop.f32.mrb[0].mxu0
        %v557 = vadd.f32 0.0, %v556
        %v558 = vpop.f32.mrb[0].mxu0
        %559 = vmatprep.mubr.bf16.mxu0 0
        %560 = vmatmul.mubr.bf16.gmra.mrb[0].mxu0 %v464
        %v561 = vpop.f32.mrb[0].mxu0
        %v562 = vadd.f32 0.0, %v561
        %v563 = vpop.f32.mrb[0].mxu0
        %v564 = vpop.f32.mrb[0].mxu0
        %v565 = vadd.f32 0.0, %v564
        %v566 = vpop.f32.mrb[0].mxu0
        %567 = vmatprep.mubr.bf16.mxu0 0
        %568 = vmatmul.mubr.bf16.gmra.mrb[0].mxu0 %v465
        %v569 = vpop.f32.mrb[0].mxu0
        %v570 = vadd.f32 0.0, %v569
        %v571 = vpop.f32.mrb[0].mxu0
        %v572 = vpop.f32.mrb[0].mxu0
        %v573 = vadd.f32 0.0, %v572
        %v574 = vpop.f32.mrb[0].mxu0
        %575 = vmatprep.mubr.bf16.mxu0 0
        %576 = vmatmul.mubr.bf16.gmra.mrb[0].mxu0 %v466
        %v577 = vpop.f32.mrb[0].mxu0
        %v578 = vadd.f32 0.0, %v577
        %v579 = vpop.f32.mrb[0].mxu0
        %v580 = vpop.f32.mrb[0].mxu0
        %v581 = vadd.f32 0.0, %v580
        %v582 = vpop.f32.mrb[0].mxu0
        %583 = vdwg.mxu0
        %v584 = vld [vmem:[%s2] sm:$0x1]
        %v586 = vlaneseq
        %v587 = vshrl.u32 %v586, 7
        %v588 = vsub.s32 0, %v587
        %v589 = vrot.slane %v584, %v588
        %v591 = vmul.f32 %v554, %v589
        %v592 = vmul.f32 %v557, %v589
        %v593 = vmul.f32 %v562, %v589
        %v594 = vmul.f32 %v565, %v589
        %v595 = vmul.f32 %v570, %v589
        %v596 = vmul.f32 %v573, %v589
        %v597 = vmul.f32 %v578, %v589
        %v598 = vmul.f32 %v581, %v589
        %v599 = vld [vmem:[%s3] sm:$0x1]
        %v601 = vlaneseq
        %v602 = vshrl.u32 %v601, 7
        %v603 = vsub.s32 0, %v602
        %v604 = vrot.slane %v599, %v603
        %v606 = vadd.f32 %v591, %v604
        %v607 = vadd.f32 %v592, %v604
        %v608 = vadd.f32 %v593, %v604
        %v609 = vadd.f32 %v594, %v604
        %v610 = vadd.f32 %v595, %v604
        %v611 = vadd.f32 %v596, %v604
        %v612 = vadd.f32 %v597, %v604
        %v613 = vadd.f32 %v598, %v604
        %v614 = vmax.f32 %v606, 0.0
        %v615 = vmax.f32 %v607, 0.0
        %v616 = vmax.f32 %v608, 0.0
        %v617 = vmax.f32 %v609, 0.0
        %v618 = vmax.f32 %v610, 0.0
        %v619 = vmax.f32 %v611, 0.0
        %v620 = vmax.f32 %v612, 0.0
        %v621 = vmax.f32 %v613, 0.0
        %622 = vst [vmem:[#allocation2] sm:$0xff] 0.0
        %623 = vst [vmem:[#allocation2 + $0x8] sm:$0x3] 0.0
        %s624 = scalar_lea.vmem [#allocation2], 144
        %625 = vst [vmem:[%s624] sm:$0xff] 0.0
        %626 = vst [vmem:[%s624 + $0x8] sm:$0x3] 0.0
        %s627 = scalar_lea.vmem [#allocation2], 16
        %628 = vst [vmem:[%s627] sm:$0x1] 0.0
        %629 = vst [vmem:[%s627 + $0x10] sm:$0x1] 0.0
        %630 = vst [vmem:[%s627 + $0x20] sm:$0x1] 0.0
        %631 = vst [vmem:[%s627 + $0x30] sm:$0x1] 0.0
        %632 = vst [vmem:[%s627 + $0x40] sm:$0x1] 0.0
        %633 = vst [vmem:[%s627 + $0x50] sm:$0x1] 0.0
        %634 = vst [vmem:[%s627 + $0x60] sm:$0x1] 0.0
        %635 = vst [vmem:[%s627 + $0x70] sm:$0x1] 0.0
        %636 = vst [vmem:[%s627 + $0x9] sm:$0x1] 0.0
        %637 = vst [vmem:[%s627 + $0x19] sm:$0x1] 0.0
        %638 = vst [vmem:[%s627 + $0x29] sm:$0x1] 0.0
        %639 = vst [vmem:[%s627 + $0x39] sm:$0x1] 0.0
        %640 = vst [vmem:[%s627 + $0x49] sm:$0x1] 0.0
        %641 = vst [vmem:[%s627 + $0x59] sm:$0x1] 0.0
        %642 = vst [vmem:[%s627 + $0x69] sm:$0x1] 0.0
        %643 = vst [vmem:[%s627 + $0x79] sm:$0x1] 0.0
        %644 = vst [vmem:[%s627 + $0x1] sm:$0xff] %v614
        %645 = vst [vmem:[%s627 + $0x11] sm:$0xff] %v615
        %646 = vst [vmem:[%s627 + $0x21] sm:$0xff] %v616
        %647 = vst [vmem:[%s627 + $0x31] sm:$0xff] %v617
        %648 = vst [vmem:[%s627 + $0x41] sm:$0xff] %v618
        %649 = vst [vmem:[%s627 + $0x51] sm:$0xff] %v619
        %650 = vst [vmem:[%s627 + $0x61] sm:$0xff] %v620
        %651 = vst [vmem:[%s627 + $0x71] sm:$0xff] %v621
        %v652 = vld [vmem:[#allocation2] sm:$0xff]
        %v653 = vld [vmem:[#allocation2 + $0x10] sm:$0xff]
        %v654 = vld [vmem:[#allocation2 + $0x20] sm:$0xff]
        %v655 = vld [vmem:[#allocation2 + $0x30] sm:$0xff]
        %v656 = vld [vmem:[#allocation2 + $0x40] sm:$0xff]
        %v657 = vld [vmem:[#allocation2 + $0x50] sm:$0xff]
        %v658 = vld [vmem:[#allocation2 + $0x60] sm:$0xff]
        %v659 = vld [vmem:[#allocation2 + $0x70] sm:$0xff]
        %v660 = vpack.c.bf16 %v653, %v652
        %v661 = vpack.c.bf16 %v655, %v654
        %v662 = vpack.c.bf16 %v657, %v656
        %v663 = vpack.c.bf16 %v659, %v658
        %664 = vst [vmem:[#allocation3] sm:$0xff] %v660
        %665 = vst [vmem:[#allocation3 + $0x48] sm:$0xff] %v661
        %666 = vst [vmem:[#allocation3 + $0x90] sm:$0xff] %v662
        %667 = vst [vmem:[#allocation3 + $0xd8] sm:$0xff] %v663
        %v668 = vld [vmem:[#allocation2 + $0x1] sm:$0xff]
        %v669 = vld [vmem:[#allocation2 + $0x11] sm:$0xff]
        %v670 = vld [vmem:[#allocation2 + $0x21] sm:$0xff]
        %v671 = vld [vmem:[#allocation2 + $0x31] sm:$0xff]
        %v672 = vld [vmem:[#allocation2 + $0x41] sm:$0xff]
        %v673 = vld [vmem:[#allocation2 + $0x51] sm:$0xff]
        %v674 = vld [vmem:[#allocation2 + $0x61] sm:$0xff]
        %v675 = vld [vmem:[#allocation2 + $0x71] sm:$0xff]
        %v676 = vpack.c.bf16 %v669, %v668
        %v677 = vpack.c.bf16 %v671, %v670
        %v678 = vpack.c.bf16 %v673, %v672
        %v679 = vpack.c.bf16 %v675, %v674
        %680 = vst [vmem:[#allocation3 + $0x8] sm:$0xff] %v676
        %681 = vst [vmem:[#allocation3 + $0x50] sm:$0xff] %v677
        %682 = vst [vmem:[#allocation3 + $0x98] sm:$0xff] %v678
        %683 = vst [vmem:[#allocation3 + $0xe0] sm:$0xff] %v679
        %v684 = vld [vmem:[#allocation2 + $0x2] sm:$0xff]
        %v685 = vld [vmem:[#allocation2 + $0x12] sm:$0xff]
        %v686 = vld [vmem:[#allocation2 + $0x22] sm:$0xff]
        %v687 = vld [vmem:[#allocation2 + $0x32] sm:$0xff]
        %v688 = vld [vmem:[#allocation2 + $0x42] sm:$0xff]
        %v689 = vld [vmem:[#allocation2 + $0x52] sm:$0xff]
        %v690 = vld [vmem:[#allocation2 + $0x62] sm:$0xff]
        %v691 = vld [vmem:[#allocation2 + $0x72] sm:$0xff]
        %v692 = vpack.c.bf16 %v685, %v684
        %v693 = vpack.c.bf16 %v687, %v686
        %v694 = vpack.c.bf16 %v689, %v688
        %v695 = vpack.c.bf16 %v691, %v690
        %696 = vst [vmem:[#allocation3 + $0x10] sm:$0xff] %v692
        %697 = vst [vmem:[#allocation3 + $0x58] sm:$0xff] %v693
        %698 = vst [vmem:[#allocation3 + $0xa0] sm:$0xff] %v694
        %699 = vst [vmem:[#allocation3 + $0xe8] sm:$0xff] %v695
        %v700 = vld [vmem:[%s627] sm:$0xff]
        %v701 = vld [vmem:[%s627 + $0x10] sm:$0xff]
        %v702 = vld [vmem:[%s627 + $0x20] sm:$0xff]
        %v703 = vld [vmem:[%s627 + $0x30] sm:$0xff]
        %v704 = vld [vmem:[%s627 + $0x40] sm:$0xff]
        %v705 = vld [vmem:[%s627 + $0x50] sm:$0xff]
        %v706 = vld [vmem:[%s627 + $0x60] sm:$0xff]
        %v707 = vld [vmem:[%s627 + $0x70] sm:$0xff]
        %v708 = vpack.c.bf16 %v701, %v700
        %v709 = vpack.c.bf16 %v703, %v702
        %v710 = vpack.c.bf16 %v705, %v704
        %v711 = vpack.c.bf16 %v707, %v706
        %712 = vst [vmem:[#allocation3 + $0x18] sm:$0xff] %v708
        %713 = vst [vmem:[#allocation3 + $0x60] sm:$0xff] %v709
        %714 = vst [vmem:[#allocation3 + $0xa8] sm:$0xff] %v710
        %715 = vst [vmem:[#allocation3 + $0xf0] sm:$0xff] %v711
        %v716 = vld [vmem:[%s627 + $0x1] sm:$0xff]
        %v717 = vld [vmem:[%s627 + $0x11] sm:$0xff]
        %v718 = vld [vmem:[%s627 + $0x21] sm:$0xff]
        %v719 = vld [vmem:[%s627 + $0x31] sm:$0xff]
        %v720 = vld [vmem:[%s627 + $0x41] sm:$0xff]
        %v721 = vld [vmem:[%s627 + $0x51] sm:$0xff]
        %v722 = vld [vmem:[%s627 + $0x61] sm:$0xff]
        %v723 = vld [vmem:[%s627 + $0x71] sm:$0xff]
        %v724 = vpack.c.bf16 %v717, %v716
        %v725 = vpack.c.bf16 %v719, %v718
        %v726 = vpack.c.bf16 %v721, %v720
        %v727 = vpack.c.bf16 %v723, %v722
        %728 = vst [vmem:[#allocation3 + $0x20] sm:$0xff] %v724
        %729 = vst [vmem:[#allocation3 + $0x68] sm:$0xff] %v725
        %730 = vst [vmem:[#allocation3 + $0xb0] sm:$0xff] %v726
        %731 = vst [vmem:[#allocation3 + $0xf8] sm:$0xff] %v727
        %v732 = vld [vmem:[%s627 + $0x2] sm:$0xff]
        %v733 = vld [vmem:[%s627 + $0x12] sm:$0xff]
        %v734 = vld [vmem:[%s627 + $0x22] sm:$0xff]
        %v735 = vld [vmem:[%s627 + $0x32] sm:$0xff]
        %v736 = vld [vmem:[%s627 + $0x42] sm:$0xff]
        %v737 = vld [vmem:[%s627 + $0x52] sm:$0xff]
        %v738 = vld [vmem:[%s627 + $0x62] sm:$0xff]
        %v739 = vld [vmem:[%s627 + $0x72] sm:$0xff]
        %v740 = vpack.c.bf16 %v733, %v732
        %v741 = vpack.c.bf16 %v735, %v734
        %v742 = vpack.c.bf16 %v737, %v736
        %v743 = vpack.c.bf16 %v739, %v738
        %744 = vst [vmem:[#allocation3 + $0x28] sm:$0xff] %v740
        %745 = vst [vmem:[#allocation3 + $0x70] sm:$0xff] %v741
        %746 = vst [vmem:[#allocation3 + $0xb8] sm:$0xff] %v742
        %747 = vst [vmem:[#allocation3 + $0x100] sm:$0xff] %v743
        %s748 = scalar_lea.vmem [#allocation2], 32
        %v749 = vld [vmem:[%s748] sm:$0xff]
        %v750 = vld [vmem:[%s748 + $0x10] sm:$0xff]
        %v751 = vld [vmem:[%s748 + $0x20] sm:$0xff]
        %v752 = vld [vmem:[%s748 + $0x30] sm:$0xff]
        %v753 = vld [vmem:[%s748 + $0x40] sm:$0xff]
        %v754 = vld [vmem:[%s748 + $0x50] sm:$0xff]
        %v755 = vld [vmem:[%s748 + $0x60] sm:$0xff]
        %v756 = vld [vmem:[%s748 + $0x70] sm:$0xff]
        %v757 = vpack.c.bf16 %v750, %v749
        %v758 = vpack.c.bf16 %v752, %v751
        %v759 = vpack.c.bf16 %v754, %v753
        %v760 = vpack.c.bf16 %v756, %v755
        %761 = vst [vmem:[#allocation3 + $0x30] sm:$0xff] %v757
        %762 = vst [vmem:[#allocation3 + $0x78] sm:$0xff] %v758
        %763 = vst [vmem:[#allocation3 + $0xc0] sm:$0xff] %v759
        %764 = vst [vmem:[#allocation3 + $0x108] sm:$0xff] %v760
        %v765 = vld [vmem:[%s748 + $0x1] sm:$0xff]
        %v766 = vld [vmem:[%s748 + $0x11] sm:$0xff]
        %v767 = vld [vmem:[%s748 + $0x21] sm:$0xff]
        %v768 = vld [vmem:[%s748 + $0x31] sm:$0xff]
        %v769 = vld [vmem:[%s748 + $0x41] sm:$0xff]
        %v770 = vld [vmem:[%s748 + $0x51] sm:$0xff]
        %v771 = vld [vmem:[%s748 + $0x61] sm:$0xff]
        %v772 = vld [vmem:[%s748 + $0x71] sm:$0xff]
        %v773 = vpack.c.bf16 %v766, %v765
        %v774 = vpack.c.bf16 %v768, %v767
        %v775 = vpack.c.bf16 %v770, %v769
        %v776 = vpack.c.bf16 %v772, %v771
        %777 = vst [vmem:[#allocation3 + $0x38] sm:$0xff] %v773
        %778 = vst [vmem:[#allocation3 + $0x80] sm:$0xff] %v774
        %779 = vst [vmem:[#allocation3 + $0xc8] sm:$0xff] %v775
        %780 = vst [vmem:[#allocation3 + $0x110] sm:$0xff] %v776
        %v781 = vld [vmem:[%s748 + $0x2] sm:$0xff]
        %v782 = vld [vmem:[%s748 + $0x12] sm:$0xff]
        %v783 = vld [vmem:[%s748 + $0x22] sm:$0xff]
        %v784 = vld [vmem:[%s748 + $0x32] sm:$0xff]
        %v785 = vld [vmem:[%s748 + $0x42] sm:$0xff]
        %v786 = vld [vmem:[%s748 + $0x52] sm:$0xff]
        %v787 = vld [vmem:[%s748 + $0x62] sm:$0xff]
        %v788 = vld [vmem:[%s748 + $0x72] sm:$0xff]
        %v789 = vpack.c.bf16 %v782, %v781
        %v790 = vpack.c.bf16 %v784, %v783
        %v791 = vpack.c.bf16 %v786, %v785
        %v792 = vpack.c.bf16 %v788, %v787
        %793 = vst [vmem:[#allocation3 + $0x40] sm:$0xff] %v789
        %794 = vst [vmem:[#allocation3 + $0x88] sm:$0xff] %v790
        %795 = vst [vmem:[#allocation3 + $0xd0] sm:$0xff] %v791
        %796 = vst [vmem:[#allocation3 + $0x118] sm:$0xff] %v792
        %v797 = vld [vmem:[#allocation3] sm:$0xff]
        %v798 = vld [vmem:[#allocation3 + $0x8] sm:$0xff]
        %v799 = vld [vmem:[#allocation3 + $0x10] sm:$0xff]
        %v800 = vld [vmem:[#allocation3 + $0x18] sm:$0xff]
        %v801 = vld [vmem:[#allocation3 + $0x20] sm:$0xff]
        %v802 = vld [vmem:[#allocation3 + $0x28] sm:$0xff]
        %v803 = vld [vmem:[#allocation3 + $0x30] sm:$0xff]
        %v804 = vld [vmem:[#allocation3 + $0x38] sm:$0xff]
        %v805 = vld [vmem:[#allocation3 + $0x40] sm:$0xff]
        %v806 = vld [vmem:[#allocation3 + $0x48] sm:$0xff]
        %v807 = vld [vmem:[#allocation3 + $0x50] sm:$0xff]
        %v808 = vld [vmem:[#allocation3 + $0x58] sm:$0xff]
        %v809 = vld [vmem:[#allocation3 + $0x60] sm:$0xff]
        %v810 = vld [vmem:[#allocation3 + $0x68] sm:$0xff]
        %v811 = vld [vmem:[#allocation3 + $0x70] sm:$0xff]
        %v812 = vld [vmem:[#allocation3 + $0x78] sm:$0xff]
        %v813 = vld [vmem:[#allocation3 + $0x80] sm:$0xff]
        %v814 = vld [vmem:[#allocation3 + $0x88] sm:$0xff]
        %v815 = vld [vmem:[#allocation3 + $0x90] sm:$0xff]
        %v816 = vld [vmem:[#allocation3 + $0x98] sm:$0xff]
        %v817 = vld [vmem:[#allocation3 + $0xa0] sm:$0xff]
        %v818 = vld [vmem:[#allocation3 + $0xa8] sm:$0xff]
        %v819 = vld [vmem:[#allocation3 + $0xb0] sm:$0xff]
        %v820 = vld [vmem:[#allocation3 + $0xb8] sm:$0xff]
        %v821 = vld [vmem:[#allocation3 + $0xc0] sm:$0xff]
        %v822 = vld [vmem:[#allocation3 + $0xc8] sm:$0xff]
        %v823 = vld [vmem:[#allocation3 + $0xd0] sm:$0xff]
        %v824 = vld [vmem:[#allocation3 + $0xd8] sm:$0xff]
        %v825 = vld [vmem:[#allocation3 + $0xe0] sm:$0xff]
        %v826 = vld [vmem:[#allocation3 + $0xe8] sm:$0xff]
        %v827 = vld [vmem:[#allocation3 + $0xf0] sm:$0xff]
        %v828 = vld [vmem:[#allocation3 + $0xf8] sm:$0xff]
        %v829 = vld [vmem:[#allocation3 + $0x100] sm:$0xff]
        %v830 = vld [vmem:[#allocation3 + $0x108] sm:$0xff]
        %v831 = vld [vmem:[#allocation3 + $0x110] sm:$0xff]
        %v832 = vld [vmem:[#allocation3 + $0x118] sm:$0xff]
        %v833 = vld [vmem:[#allocation9] sm:$0xf]
        %v834 = vld [vmem:[#allocation9 + $0x4] sm:$0xf]
        %v835 = vld [vmem:[#allocation9 + $0x8] sm:$0xf]
        %v836 = vld [vmem:[#allocation9 + $0xc] sm:$0xf]
        %v837 = vld [vmem:[#allocation9 + $0x10] sm:$0xf]
        %v838 = vld [vmem:[#allocation9 + $0x14] sm:$0xf]
        %v839 = vld [vmem:[#allocation9 + $0x18] sm:$0xf]
        %v840 = vld [vmem:[#allocation9 + $0x1c] sm:$0xf]
        %v841 = vld [vmem:[#allocation9 + $0x20] sm:$0xf]
        %v842 = vld [vmem:[#allocation9 + $0x24] sm:$0xf]
        %v843 = vld [vmem:[#allocation9 + $0x28] sm:$0xf]
        %v844 = vld [vmem:[#allocation9 + $0x2c] sm:$0xf]
        %v845 = vld [vmem:[#allocation9 + $0x30] sm:$0xf]
        %v846 = vld [vmem:[#allocation9 + $0x34] sm:$0xf]
        %v847 = vld [vmem:[#allocation9 + $0x38] sm:$0xf]
        %v848 = vld [vmem:[#allocation9 + $0x3c] sm:$0xf]
        %v849 = vld [vmem:[#allocation9 + $0x40] sm:$0xf]
        %v850 = vld [vmem:[#allocation9 + $0x44] sm:$0xf]
        %v851 = vld [vmem:[#allocation9 + $0x48] sm:$0xf]
        %v852 = vld [vmem:[#allocation9 + $0x4c] sm:$0xf]
        %v853 = vld [vmem:[#allocation9 + $0x50] sm:$0xf]
        %v854 = vld [vmem:[#allocation9 + $0x54] sm:$0xf]
        %v855 = vld [vmem:[#allocation9 + $0x58] sm:$0xf]
        %v856 = vld [vmem:[#allocation9 + $0x5c] sm:$0xf]
        %v857 = vld [vmem:[#allocation9 + $0x60] sm:$0xf]
        %v858 = vld [vmem:[#allocation9 + $0x64] sm:$0xf]
        %v859 = vld [vmem:[#allocation9 + $0x68] sm:$0xf]
        %v860 = vld [vmem:[#allocation9 + $0x6c] sm:$0xf]
        %v861 = vld [vmem:[#allocation9 + $0x70] sm:$0xf]
        %v862 = vld [vmem:[#allocation9 + $0x74] sm:$0xf]
        %v863 = vld [vmem:[#allocation9 + $0x78] sm:$0xf]
        %v864 = vld [vmem:[#allocation9 + $0x7c] sm:$0xf]
        %v865 = vld [vmem:[#allocation9 + $0x80] sm:$0xf]
        %v866 = vld [vmem:[#allocation9 + $0x84] sm:$0xf]
        %v867 = vld [vmem:[#allocation9 + $0x88] sm:$0xf]
        %v868 = vld [vmem:[#allocation9 + $0x8c] sm:$0xf]
        %v869 = vld [vmem:[#allocation9 + $0x90] sm:$0xf]
        %v870 = vld [vmem:[#allocation9 + $0x94] sm:$0xf]
        %v871 = vld [vmem:[#allocation9 + $0x98] sm:$0xf]
        %v872 = vld [vmem:[#allocation9 + $0x9c] sm:$0xf]
        %v873 = vld [vmem:[#allocation9 + $0xa0] sm:$0xf]
        %v874 = vld [vmem:[#allocation9 + $0xa4] sm:$0xf]
        %v875 = vld [vmem:[#allocation9 + $0xa8] sm:$0xf]
        %v876 = vld [vmem:[#allocation9 + $0xac] sm:$0xf]
        %v877 = vld [vmem:[#allocation9 + $0xb0] sm:$0xf]
        %v878 = vld [vmem:[#allocation9 + $0xb4] sm:$0xf]
        %v879 = vld [vmem:[#allocation9 + $0xb8] sm:$0xf]
        %v880 = vld [vmem:[#allocation9 + $0xbc] sm:$0xf]
        %v881 = vld [vmem:[#allocation9 + $0xc0] sm:$0xf]
        %v882 = vld [vmem:[#allocation9 + $0xc4] sm:$0xf]
        %v883 = vld [vmem:[#allocation9 + $0xc8] sm:$0xf]
        %v884 = vld [vmem:[#allocation9 + $0xcc] sm:$0xf]
        %v885 = vld [vmem:[#allocation9 + $0xd0] sm:$0xf]
        %v886 = vld [vmem:[#allocation9 + $0xd4] sm:$0xf]
        %v887 = vld [vmem:[#allocation9 + $0xd8] sm:$0xf]
        %v888 = vld [vmem:[#allocation9 + $0xdc] sm:$0xf]
        %v889 = vld [vmem:[#allocation9 + $0xe0] sm:$0xf]
        %v890 = vld [vmem:[#allocation9 + $0xe4] sm:$0xf]
        %v891 = vld [vmem:[#allocation9 + $0xe8] sm:$0xf]
        %v892 = vld [vmem:[#allocation9 + $0xec] sm:$0xf]
        %v893 = vld [vmem:[#allocation9 + $0xf0] sm:$0xf]
        %v894 = vld [vmem:[#allocation9 + $0xf4] sm:$0xf]
        %v895 = vld [vmem:[#allocation9 + $0xf8] sm:$0xf]
        %v896 = vld [vmem:[#allocation9 + $0xfc] sm:$0xf]
        %v897 = vld [vmem:[#allocation9 + $0x100] sm:$0xf]
        %v898 = vld [vmem:[#allocation9 + $0x104] sm:$0xf]
        %v899 = vld [vmem:[#allocation9 + $0x108] sm:$0xf]
        %v900 = vld [vmem:[#allocation9 + $0x10c] sm:$0xf]
        %v901 = vld [vmem:[#allocation9 + $0x110] sm:$0xf]
        %v902 = vld [vmem:[#allocation9 + $0x114] sm:$0xf]
        %v903 = vld [vmem:[#allocation9 + $0x118] sm:$0xf]
        %v904 = vld [vmem:[#allocation9 + $0x11c] sm:$0xf]
        %v905 = vld [vmem:[#allocation9 + $0x120] sm:$0xf]
        %v906 = vld [vmem:[#allocation9 + $0x124] sm:$0xf]
        %v907 = vld [vmem:[#allocation9 + $0x128] sm:$0xf]
        %v908 = vld [vmem:[#allocation9 + $0x12c] sm:$0xf]
        %v909 = vld [vmem:[#allocation9 + $0x130] sm:$0xf]
        %v910 = vld [vmem:[#allocation9 + $0x134] sm:$0xf]
        %v911 = vld [vmem:[#allocation9 + $0x138] sm:$0xf]
        %v912 = vld [vmem:[#allocation9 + $0x13c] sm:$0xf]
        %v913 = vld [vmem:[#allocation9 + $0x140] sm:$0xf]
        %v914 = vld [vmem:[#allocation9 + $0x144] sm:$0xf]
        %v915 = vld [vmem:[#allocation9 + $0x148] sm:$0xf]
        %v916 = vld [vmem:[#allocation9 + $0x14c] sm:$0xf]
        %v917 = vld [vmem:[#allocation9 + $0x150] sm:$0xf]
        %v918 = vld [vmem:[#allocation9 + $0x154] sm:$0xf]
        %v919 = vld [vmem:[#allocation9 + $0x158] sm:$0xf]
        %v920 = vld [vmem:[#allocation9 + $0x15c] sm:$0xf]
        %v921 = vld [vmem:[#allocation9 + $0x160] sm:$0xf]
        %v922 = vld [vmem:[#allocation9 + $0x164] sm:$0xf]
        %v923 = vld [vmem:[#allocation9 + $0x168] sm:$0xf]
        %v924 = vld [vmem:[#allocation9 + $0x16c] sm:$0xf]
        %v925 = vld [vmem:[#allocation9 + $0x170] sm:$0xf]
        %v926 = vld [vmem:[#allocation9 + $0x174] sm:$0xf]
        %v927 = vld [vmem:[#allocation9 + $0x178] sm:$0xf]
        %v928 = vld [vmem:[#allocation9 + $0x17c] sm:$0xf]
        %v929 = vld [vmem:[#allocation9 + $0x180] sm:$0xf]
        %v930 = vld [vmem:[#allocation9 + $0x184] sm:$0xf]
        %v931 = vld [vmem:[#allocation9 + $0x188] sm:$0xf]
        %v932 = vld [vmem:[#allocation9 + $0x18c] sm:$0xf]
        %v933 = vld [vmem:[#allocation9 + $0x190] sm:$0xf]
        %v934 = vld [vmem:[#allocation9 + $0x194] sm:$0xf]
        %v935 = vld [vmem:[#allocation9 + $0x198] sm:$0xf]
        %v936 = vld [vmem:[#allocation9 + $0x19c] sm:$0xf]
        %v937 = vld [vmem:[#allocation9 + $0x1a0] sm:$0xf]
        %v938 = vld [vmem:[#allocation9 + $0x1a4] sm:$0xf]
        %v939 = vld [vmem:[#allocation9 + $0x1a8] sm:$0xf]
        %v940 = vld [vmem:[#allocation9 + $0x1ac] sm:$0xf]
        %v941 = vld [vmem:[#allocation9 + $0x1b0] sm:$0xf]
        %v942 = vld [vmem:[#allocation9 + $0x1b4] sm:$0xf]
        %v943 = vld [vmem:[#allocation9 + $0x1b8] sm:$0xf]
        %v944 = vld [vmem:[#allocation9 + $0x1bc] sm:$0xf]
        %v945 = vld [vmem:[#allocation9 + $0x1c0] sm:$0xf]
        %v946 = vld [vmem:[#allocation9 + $0x1c4] sm:$0xf]
        %v947 = vld [vmem:[#allocation9 + $0x1c8] sm:$0xf]
        %v948 = vld [vmem:[#allocation9 + $0x1cc] sm:$0xf]
        %v949 = vld [vmem:[#allocation9 + $0x1d0] sm:$0xf]
        %v950 = vld [vmem:[#allocation9 + $0x1d4] sm:$0xf]
        %v951 = vld [vmem:[#allocation9 + $0x1d8] sm:$0xf]
        %v952 = vld [vmem:[#allocation9 + $0x1dc] sm:$0xf]
        %v953 = vld [vmem:[#allocation9 + $0x1e0] sm:$0xf]
        %v954 = vld [vmem:[#allocation9 + $0x1e4] sm:$0xf]
        %v955 = vld [vmem:[#allocation9 + $0x1e8] sm:$0xf]
        %v956 = vld [vmem:[#allocation9 + $0x1ec] sm:$0xf]
        %v957 = vld [vmem:[#allocation9 + $0x1f0] sm:$0xf]
        %v958 = vld [vmem:[#allocation9 + $0x1f4] sm:$0xf]
        %v959 = vld [vmem:[#allocation9 + $0x1f8] sm:$0xf]
        %v960 = vld [vmem:[#allocation9 + $0x1fc] sm:$0xf]
        %v961 = vld [vmem:[#allocation9 + $0x200] sm:$0xf]
        %v962 = vld [vmem:[#allocation9 + $0x204] sm:$0xf]
        %v963 = vld [vmem:[#allocation9 + $0x208] sm:$0xf]
        %v964 = vld [vmem:[#allocation9 + $0x20c] sm:$0xf]
        %v965 = vld [vmem:[#allocation9 + $0x210] sm:$0xf]
        %v966 = vld [vmem:[#allocation9 + $0x214] sm:$0xf]
        %v967 = vld [vmem:[#allocation9 + $0x218] sm:$0xf]
        %v968 = vld [vmem:[#allocation9 + $0x21c] sm:$0xf]
        %v969 = vld [vmem:[#allocation9 + $0x220] sm:$0xf]
        %v970 = vld [vmem:[#allocation9 + $0x224] sm:$0xf]
        %v971 = vld [vmem:[#allocation9 + $0x228] sm:$0xf]
        %v972 = vld [vmem:[#allocation9 + $0x22c] sm:$0xf]
        %v973 = vld [vmem:[#allocation9 + $0x230] sm:$0xf]
        %v974 = vld [vmem:[#allocation9 + $0x234] sm:$0xf]
        %v975 = vld [vmem:[#allocation9 + $0x238] sm:$0xf]
        %v976 = vld [vmem:[#allocation9 + $0x23c] sm:$0xf]
        %v1121 = vunpack.c.l.b16 %v833
        %v1122 = vunpack.c.l.b16 %v834
        %v1123 = vunpack.c.l.b16 %v835
        %v1124 = vunpack.c.l.b16 %v836
        %v1125 = vunpack.c.l.b16 %v837
        %v1126 = vunpack.c.l.b16 %v838
        %v1127 = vunpack.c.l.b16 %v839
        %v1128 = vunpack.c.l.b16 %v840
        %v1129 = vunpack.c.l.b16 %v841
        %v1130 = vunpack.c.l.b16 %v842
        %v1131 = vunpack.c.l.b16 %v843
        %v1132 = vunpack.c.l.b16 %v844
        %v1133 = vunpack.c.l.b16 %v845
        %v1134 = vunpack.c.l.b16 %v846
        %v1135 = vunpack.c.l.b16 %v847
        %v1136 = vunpack.c.l.b16 %v848
        %v1137 = vunpack.c.l.b16 %v849
        %v1138 = vunpack.c.l.b16 %v850
        %v1139 = vunpack.c.l.b16 %v851
        %v1140 = vunpack.c.l.b16 %v852
        %v1141 = vunpack.c.l.b16 %v853
        %v1142 = vunpack.c.l.b16 %v854
        %v1143 = vunpack.c.l.b16 %v855
        %v1144 = vunpack.c.l.b16 %v856
        %v1145 = vunpack.c.l.b16 %v857
        %v1146 = vunpack.c.l.b16 %v858
        %v1147 = vunpack.c.l.b16 %v859
        %v1148 = vunpack.c.l.b16 %v860
        %v1149 = vunpack.c.l.b16 %v861
        %v1150 = vunpack.c.l.b16 %v862
        %v1151 = vunpack.c.l.b16 %v863
        %v1152 = vunpack.c.l.b16 %v864
        %v1153 = vunpack.c.l.b16 %v865
        %v1154 = vunpack.c.l.b16 %v866
        %v1155 = vunpack.c.l.b16 %v867
        %v1156 = vunpack.c.l.b16 %v868
        %v1157 = vunpack.c.l.b16 %v869
        %v1158 = vunpack.c.l.b16 %v870
        %v1159 = vunpack.c.l.b16 %v871
        %v1160 = vunpack.c.l.b16 %v872
        %v1161 = vunpack.c.l.b16 %v873
        %v1162 = vunpack.c.l.b16 %v874
        %v1163 = vunpack.c.l.b16 %v875
        %v1164 = vunpack.c.l.b16 %v876
        %v1165 = vunpack.c.l.b16 %v877
        %v1166 = vunpack.c.l.b16 %v878
        %v1167 = vunpack.c.l.b16 %v879
        %v1168 = vunpack.c.l.b16 %v880
        %v1169 = vunpack.c.l.b16 %v881
        %v1170 = vunpack.c.l.b16 %v882
        %v1171 = vunpack.c.l.b16 %v883
        %v1172 = vunpack.c.l.b16 %v884
        %v1173 = vunpack.c.l.b16 %v885
        %v1174 = vunpack.c.l.b16 %v886
        %v1175 = vunpack.c.l.b16 %v887
        %v1176 = vunpack.c.l.b16 %v888
        %v1177 = vunpack.c.l.b16 %v889
        %v1178 = vunpack.c.l.b16 %v890
        %v1179 = vunpack.c.l.b16 %v891
        %v1180 = vunpack.c.l.b16 %v892
        %v1181 = vunpack.c.l.b16 %v893
        %v1182 = vunpack.c.l.b16 %v894
        %v1183 = vunpack.c.l.b16 %v895
        %v1184 = vunpack.c.l.b16 %v896
        %v1185 = vunpack.c.l.b16 %v897
        %v1186 = vunpack.c.l.b16 %v898
        %v1187 = vunpack.c.l.b16 %v899
        %v1188 = vunpack.c.l.b16 %v900
        %v1189 = vunpack.c.l.b16 %v901
        %v1190 = vunpack.c.l.b16 %v902
        %v1191 = vunpack.c.l.b16 %v903
        %v1192 = vunpack.c.l.b16 %v904
        %v1193 = vunpack.c.l.b16 %v905
        %v1194 = vunpack.c.l.b16 %v906
        %v1195 = vunpack.c.l.b16 %v907
        %v1196 = vunpack.c.l.b16 %v908
        %v1197 = vunpack.c.l.b16 %v909
        %v1198 = vunpack.c.l.b16 %v910
        %v1199 = vunpack.c.l.b16 %v911
        %v1200 = vunpack.c.l.b16 %v912
        %v1201 = vunpack.c.l.b16 %v913
        %v1202 = vunpack.c.l.b16 %v914
        %v1203 = vunpack.c.l.b16 %v915
        %v1204 = vunpack.c.l.b16 %v916
        %v1205 = vunpack.c.l.b16 %v917
        %v1206 = vunpack.c.l.b16 %v918
        %v1207 = vunpack.c.l.b16 %v919
        %v1208 = vunpack.c.l.b16 %v920
        %v1209 = vunpack.c.l.b16 %v921
        %v1210 = vunpack.c.l.b16 %v922
        %v1211 = vunpack.c.l.b16 %v923
        %v1212 = vunpack.c.l.b16 %v924
        %v1213 = vunpack.c.l.b16 %v925
        %v1214 = vunpack.c.l.b16 %v926
        %v1215 = vunpack.c.l.b16 %v927
        %v1216 = vunpack.c.l.b16 %v928
        %v1217 = vunpack.c.l.b16 %v929
        %v1218 = vunpack.c.l.b16 %v930
        %v1219 = vunpack.c.l.b16 %v931
        %v1220 = vunpack.c.l.b16 %v932
        %v1221 = vunpack.c.l.b16 %v933
        %v1222 = vunpack.c.l.b16 %v934
        %v1223 = vunpack.c.l.b16 %v935
        %v1224 = vunpack.c.l.b16 %v936
        %v1225 = vunpack.c.l.b16 %v937
        %v1226 = vunpack.c.l.b16 %v938
        %v1227 = vunpack.c.l.b16 %v939
        %v1228 = vunpack.c.l.b16 %v940
        %v1229 = vunpack.c.l.b16 %v941
        %v1230 = vunpack.c.l.b16 %v942
        %v1231 = vunpack.c.l.b16 %v943
        %v1232 = vunpack.c.l.b16 %v944
        %v1233 = vunpack.c.l.b16 %v945
        %v1234 = vunpack.c.l.b16 %v946
        %v1235 = vunpack.c.l.b16 %v947
        %v1236 = vunpack.c.l.b16 %v948
        %v1237 = vunpack.c.l.b16 %v949
        %v1238 = vunpack.c.l.b16 %v950
        %v1239 = vunpack.c.l.b16 %v951
        %v1240 = vunpack.c.l.b16 %v952
        %v1241 = vunpack.c.l.b16 %v953
        %v1242 = vunpack.c.l.b16 %v954
        %v1243 = vunpack.c.l.b16 %v955
        %v1244 = vunpack.c.l.b16 %v956
        %v1245 = vunpack.c.l.b16 %v957
        %v1246 = vunpack.c.l.b16 %v958
        %v1247 = vunpack.c.l.b16 %v959
        %v1248 = vunpack.c.l.b16 %v960
        %v1249 = vunpack.c.l.b16 %v961
        %v1250 = vunpack.c.l.b16 %v962
        %v1251 = vunpack.c.l.b16 %v963
        %v1252 = vunpack.c.l.b16 %v964
        %v1253 = vunpack.c.l.b16 %v965
        %v1254 = vunpack.c.l.b16 %v966
        %v1255 = vunpack.c.l.b16 %v967
        %v1256 = vunpack.c.l.b16 %v968
        %v1257 = vunpack.c.l.b16 %v969
        %v1258 = vunpack.c.l.b16 %v970
        %v1259 = vunpack.c.l.b16 %v971
        %v1260 = vunpack.c.l.b16 %v972
        %v1261 = vunpack.c.l.b16 %v973
        %v1262 = vunpack.c.l.b16 %v974
        %v1263 = vunpack.c.l.b16 %v975
        %v1264 = vunpack.c.l.b16 %v976
        %v1265 = vpack.c.b16 %v1122, %v1121
        %v1266 = vpack.c.b16 %v1124, %v1123
        %v1267 = vpack.c.b16 %v1126, %v1125
        %v1268 = vpack.c.b16 %v1128, %v1127
        %v1269 = vpack.c.b16 %v1130, %v1129
        %v1270 = vpack.c.b16 %v1132, %v1131
        %v1271 = vpack.c.b16 %v1134, %v1133
        %v1272 = vpack.c.b16 %v1136, %v1135
        %v1273 = vpack.c.b16 %v1138, %v1137
        %v1274 = vpack.c.b16 %v1140, %v1139
        %v1275 = vpack.c.b16 %v1142, %v1141
        %v1276 = vpack.c.b16 %v1144, %v1143
        %v1277 = vpack.c.b16 %v1146, %v1145
        %v1278 = vpack.c.b16 %v1148, %v1147
        %v1279 = vpack.c.b16 %v1150, %v1149
        %v1280 = vpack.c.b16 %v1152, %v1151
        %v1281 = vpack.c.b16 %v1154, %v1153
        %v1282 = vpack.c.b16 %v1156, %v1155
        %v1283 = vpack.c.b16 %v1158, %v1157
        %v1284 = vpack.c.b16 %v1160, %v1159
        %v1285 = vpack.c.b16 %v1162, %v1161
        %v1286 = vpack.c.b16 %v1164, %v1163
        %v1287 = vpack.c.b16 %v1166, %v1165
        %v1288 = vpack.c.b16 %v1168, %v1167
        %v1289 = vpack.c.b16 %v1170, %v1169
        %v1290 = vpack.c.b16 %v1172, %v1171
        %v1291 = vpack.c.b16 %v1174, %v1173
        %v1292 = vpack.c.b16 %v1176, %v1175
        %v1293 = vpack.c.b16 %v1178, %v1177
        %v1294 = vpack.c.b16 %v1180, %v1179
        %v1295 = vpack.c.b16 %v1182, %v1181
        %v1296 = vpack.c.b16 %v1184, %v1183
        %v1297 = vpack.c.b16 %v1186, %v1185
        %v1298 = vpack.c.b16 %v1188, %v1187
        %v1299 = vpack.c.b16 %v1190, %v1189
        %v1300 = vpack.c.b16 %v1192, %v1191
        %v1301 = vpack.c.b16 %v1194, %v1193
        %v1302 = vpack.c.b16 %v1196, %v1195
        %v1303 = vpack.c.b16 %v1198, %v1197
        %v1304 = vpack.c.b16 %v1200, %v1199
        %v1305 = vpack.c.b16 %v1202, %v1201
        %v1306 = vpack.c.b16 %v1204, %v1203
        %v1307 = vpack.c.b16 %v1206, %v1205
        %v1308 = vpack.c.b16 %v1208, %v1207
        %v1309 = vpack.c.b16 %v1210, %v1209
        %v1310 = vpack.c.b16 %v1212, %v1211
        %v1311 = vpack.c.b16 %v1214, %v1213
        %v1312 = vpack.c.b16 %v1216, %v1215
        %v1313 = vpack.c.b16 %v1218, %v1217
        %v1314 = vpack.c.b16 %v1220, %v1219
        %v1315 = vpack.c.b16 %v1222, %v1221
        %v1316 = vpack.c.b16 %v1224, %v1223
        %v1317 = vpack.c.b16 %v1226, %v1225
        %v1318 = vpack.c.b16 %v1228, %v1227
        %v1319 = vpack.c.b16 %v1230, %v1229
        %v1320 = vpack.c.b16 %v1232, %v1231
        %v1321 = vpack.c.b16 %v1234, %v1233
        %v1322 = vpack.c.b16 %v1236, %v1235
        %v1323 = vpack.c.b16 %v1238, %v1237
        %v1324 = vpack.c.b16 %v1240, %v1239
        %v1325 = vpack.c.b16 %v1242, %v1241
        %v1326 = vpack.c.b16 %v1244, %v1243
        %v1327 = vpack.c.b16 %v1246, %v1245
        %v1328 = vpack.c.b16 %v1248, %v1247
        %v1329 = vpack.c.b16 %v1250, %v1249
        %v1330 = vpack.c.b16 %v1252, %v1251
        %v1331 = vpack.c.b16 %v1254, %v1253
        %v1332 = vpack.c.b16 %v1256, %v1255
        %v1333 = vpack.c.b16 %v1258, %v1257
        %v1334 = vpack.c.b16 %v1260, %v1259
        %v1335 = vpack.c.b16 %v1262, %v1261
        %v1336 = vpack.c.b16 %v1264, %v1263
        %1409 = vmatprep.subr.bf16.mxu0 0
        %1410 = vmatpush1.bf16.msra.mxu0 %v1265
        %1411 = vmatprep.subr.bf16.mxu0 0
        %1412 = vmatpush1.bf16.msra.mxu0 %v1266
        %1413 = vmatprep.subr.bf16.mxu0 0
        %1414 = vmatpush1.bf16.msra.mxu0 %v1267
        %1415 = vmatprep.subr.bf16.mxu0 0
        %1416 = vmatpush1.bf16.msra.mxu0 %v1268
        %1417 = vmatprep.subr.bf16.mxu0 0
        %1418 = vmatpush1.bf16.msra.mxu0 %v1269
        %1419 = vmatprep.subr.bf16.mxu0 0
        %1420 = vmatpush1.bf16.msra.mxu0 %v1270
        %1421 = vmatprep.subr.bf16.mxu0 0
        %1422 = vmatpush1.bf16.msra.mxu0 %v1271
        %1423 = vmatprep.subr.bf16.mxu0 0
        %1424 = vmatpush1.bf16.msra.mxu0 %v1272
        %1425 = vmatprep.subr.bf16.mxu0 0
        %1426 = vmatpush1.bf16.msra.mxu0 %v1273
        %1427 = vmatprep.subr.bf16.mxu0 0
        %1428 = vmatpush1.bf16.msra.mxu0 %v1274
        %1429 = vmatprep.subr.bf16.mxu0 0
        %1430 = vmatpush1.bf16.msra.mxu0 %v1275
        %1431 = vmatprep.subr.bf16.mxu0 0
        %1432 = vmatpush1.bf16.msra.mxu0 %v1276
        %1433 = vmatprep.subr.bf16.mxu0 0
        %1434 = vmatpush1.bf16.msra.mxu0 %v1277
        %1435 = vmatprep.subr.bf16.mxu0 0
        %1436 = vmatpush1.bf16.msra.mxu0 %v1278
        %1437 = vmatprep.subr.bf16.mxu0 0
        %1438 = vmatpush1.bf16.msra.mxu0 %v1279
        %1439 = vmatprep.subr.bf16.mxu0 0
        %1440 = vmatpush1.bf16.msra.mxu0 %v1280
        %1441 = vmatprep.mubr.bf16.mxu0 %v798
        %1442 = vmatmul.mubr.bf16.gmra.mrb[0].mxu0 %v797
        %v1443 = vpop.f32.mrb[0].mxu0
        %v1444 = vadd.f32 0.0, %v1443
        %v1445 = vpop.f32.mrb[0].mxu0
        %v1446 = vpop.f32.mrb[0].mxu0
        %v1447 = vadd.f32 0.0, %v1446
        %v1448 = vpop.f32.mrb[0].mxu0
        %1449 = vmatprep.mubr.bf16.mxu0 %v807
        %1450 = vmatmul.mubr.bf16.gmra.mrb[0].mxu0 %v806
        %v1451 = vpop.f32.mrb[0].mxu0
        %v1452 = vadd.f32 0.0, %v1451
        %v1453 = vpop.f32.mrb[0].mxu0
        %v1454 = vpop.f32.mrb[0].mxu0
        %v1455 = vadd.f32 0.0, %v1454
        %v1456 = vpop.f32.mrb[0].mxu0
        %1457 = vmatprep.mubr.bf16.mxu0 %v816
        %1458 = vmatmul.mubr.bf16.gmra.mrb[0].mxu0 %v815
        %v1459 = vpop.f32.mrb[0].mxu0
        %v1460 = vadd.f32 0.0, %v1459
        %v1461 = vpop.f32.mrb[0].mxu0
        %v1462 = vpop.f32.mrb[0].mxu0
        %v1463 = vadd.f32 0.0, %v1462
        %v1464 = vpop.f32.mrb[0].mxu0
        %1465 = vmatprep.mubr.bf16.mxu0 %v825
        %1466 = vmatmul.mubr.bf16.gmra.mrb[0].mxu0 %v824
        %v1467 = vpop.f32.mrb[0].mxu0
        %v1468 = vadd.f32 0.0, %v1467
        %v1469 = vpop.f32.mrb[0].mxu0
        %v1470 = vpop.f32.mrb[0].mxu0
        %v1471 = vadd.f32 0.0, %v1470
        %v1472 = vpop.f32.mrb[0].mxu0
        %1473 = vdwg.mxu0
        %1474 = vmatprep.subr.bf16.mxu0 0
        %1475 = vmatpush1.bf16.msra.mxu0 %v1281
        %1476 = vmatprep.subr.bf16.mxu0 0
        %1477 = vmatpush1.bf16.msra.mxu0 %v1282
        %1478 = vmatprep.subr.bf16.mxu0 0
        %1479 = vmatpush1.bf16.msra.mxu0 %v1283
        %1480 = vmatprep.subr.bf16.mxu0 0
        %1481 = vmatpush1.bf16.msra.mxu0 %v1284
        %1482 = vmatprep.subr.bf16.mxu0 0
        %1483 = vmatpush1.bf16.msra.mxu0 %v1285
        %1484 = vmatprep.subr.bf16.mxu0 0
        %1485 = vmatpush1.bf16.msra.mxu0 %v1286
        %1486 = vmatprep.subr.bf16.mxu0 0
        %1487 = vmatpush1.bf16.msra.mxu0 %v1287
        %1488 = vmatprep.subr.bf16.mxu0 0
        %1489 = vmatpush1.bf16.msra.mxu0 %v1288
        %1490 = vmatprep.subr.bf16.mxu0 0
        %1491 = vmatpush1.bf16.msra.mxu0 %v1289
        %1492 = vmatprep.subr.bf16.mxu0 0
        %1493 = vmatpush1.bf16.msra.mxu0 %v1290
        %1494 = vmatprep.subr.bf16.mxu0 0
        %1495 = vmatpush1.bf16.msra.mxu0 %v1291
        %1496 = vmatprep.subr.bf16.mxu0 0
        %1497 = vmatpush1.bf16.msra.mxu0 %v1292
        %1498 = vmatprep.subr.bf16.mxu0 0
        %1499 = vmatpush1.bf16.msra.mxu0 %v1293
        %1500 = vmatprep.subr.bf16.mxu0 0
        %1501 = vmatpush1.bf16.msra.mxu0 %v1294
        %1502 = vmatprep.subr.bf16.mxu0 0
        %1503 = vmatpush1.bf16.msra.mxu0 %v1295
        %1504 = vmatprep.subr.bf16.mxu0 0
        %1505 = vmatpush1.bf16.msra.mxu0 %v1296
        %1506 = vmatprep.mubr.bf16.mxu0 %v800
        %1507 = vmatmul.mubr.bf16.gmra.mrb[0].mxu0 %v799
        %v1508 = vpop.f32.mrb[0].mxu0
        %v1509 = vadd.f32 %v1444, %v1508
        %v1510 = vpop.f32.mrb[0].mxu0
        %v1511 = vpop.f32.mrb[0].mxu0
        %v1512 = vadd.f32 %v1447, %v1511
        %v1513 = vpop.f32.mrb[0].mxu0
        %1514 = vmatprep.mubr.bf16.mxu0 %v809
        %1515 = vmatmul.mubr.bf16.gmra.mrb[0].mxu0 %v808
        %v1516 = vpop.f32.mrb[0].mxu0
        %v1517 = vadd.f32 %v1452, %v1516
        %v1518 = vpop.f32.mrb[0].mxu0
        %v1519 = vpop.f32.mrb[0].mxu0
        %v1520 = vadd.f32 %v1455, %v1519
        %v1521 = vpop.f32.mrb[0].mxu0
        %1522 = vmatprep.mubr.bf16.mxu0 %v818
        %1523 = vmatmul.mubr.bf16.gmra.mrb[0].mxu0 %v817
        %v1524 = vpop.f32.mrb[0].mxu0
        %v1525 = vadd.f32 %v1460, %v1524
        %v1526 = vpop.f32.mrb[0].mxu0
        %v1527 = vpop.f32.mrb[0].mxu0
        %v1528 = vadd.f32 %v1463, %v1527
        %v1529 = vpop.f32.mrb[0].mxu0
        %1530 = vmatprep.mubr.bf16.mxu0 %v827
        %1531 = vmatmul.mubr.bf16.gmra.mrb[0].mxu0 %v826
        %v1532 = vpop.f32.mrb[0].mxu0
        %v1533 = vadd.f32 %v1468, %v1532
        %v1534 = vpop.f32.mrb[0].mxu0
        %v1535 = vpop.f32.mrb[0].mxu0
        %v1536 = vadd.f32 %v1471, %v1535
        %v1537 = vpop.f32.mrb[0].mxu0
        %1538 = vdwg.mxu0
        %1539 = vmatprep.subr.bf16.mxu0 0
        %1540 = vmatpush1.bf16.msra.mxu0 %v1297
        %1541 = vmatprep.subr.bf16.mxu0 0
        %1542 = vmatpush1.bf16.msra.mxu0 %v1298
        %1543 = vmatprep.subr.bf16.mxu0 0
        %1544 = vmatpush1.bf16.msra.mxu0 %v1299
        %1545 = vmatprep.subr.bf16.mxu0 0
        %1546 = vmatpush1.bf16.msra.mxu0 %v1300
        %1547 = vmatprep.subr.bf16.mxu0 0
        %1548 = vmatpush1.bf16.msra.mxu0 %v1301
        %1549 = vmatprep.subr.bf16.mxu0 0
        %1550 = vmatpush1.bf16.msra.mxu0 %v1302
        %1551 = vmatprep.subr.bf16.mxu0 0
        %1552 = vmatpush1.bf16.msra.mxu0 %v1303
        %1553 = vmatprep.subr.bf16.mxu0 0
        %1554 = vmatpush1.bf16.msra.mxu0 %v1304
        %1555 = vmatprep.subr.bf16.mxu0 0
        %1556 = vmatpush1.bf16.msra.mxu0 %v1305
        %1557 = vmatprep.subr.bf16.mxu0 0
        %1558 = vmatpush1.bf16.msra.mxu0 %v1306
        %1559 = vmatprep.subr.bf16.mxu0 0
        %1560 = vmatpush1.bf16.msra.mxu0 %v1307
        %1561 = vmatprep.subr.bf16.mxu0 0
        %1562 = vmatpush1.bf16.msra.mxu0 %v1308
        %1563 = vmatprep.subr.bf16.mxu0 0
        %1564 = vmatpush1.bf16.msra.mxu0 %v1309
        %1565 = vmatprep.subr.bf16.mxu0 0
        %1566 = vmatpush1.bf16.msra.mxu0 %v1310
        %1567 = vmatprep.subr.bf16.mxu0 0
        %1568 = vmatpush1.bf16.msra.mxu0 %v1311
        %1569 = vmatprep.subr.bf16.mxu0 0
        %1570 = vmatpush1.bf16.msra.mxu0 %v1312
        %1571 = vmatprep.mubr.bf16.mxu0 %v802
        %1572 = vmatmul.mubr.bf16.gmra.mrb[0].mxu0 %v801
        %v1573 = vpop.f32.mrb[0].mxu0
        %v1574 = vadd.f32 %v1509, %v1573
        %v1575 = vpop.f32.mrb[0].mxu0
        %v1576 = vpop.f32.mrb[0].mxu0
        %v1577 = vadd.f32 %v1512, %v1576
        %v1578 = vpop.f32.mrb[0].mxu0
        %1579 = vmatprep.mubr.bf16.mxu0 %v811
        %1580 = vmatmul.mubr.bf16.gmra.mrb[0].mxu0 %v810
        %v1581 = vpop.f32.mrb[0].mxu0
        %v1582 = vadd.f32 %v1517, %v1581
        %v1583 = vpop.f32.mrb[0].mxu0
        %v1584 = vpop.f32.mrb[0].mxu0
        %v1585 = vadd.f32 %v1520, %v1584
        %v1586 = vpop.f32.mrb[0].mxu0
        %1587 = vmatprep.mubr.bf16.mxu0 %v820
        %1588 = vmatmul.mubr.bf16.gmra.mrb[0].mxu0 %v819
        %v1589 = vpop.f32.mrb[0].mxu0
        %v1590 = vadd.f32 %v1525, %v1589
        %v1591 = vpop.f32.mrb[0].mxu0
        %v1592 = vpop.f32.mrb[0].mxu0
        %v1593 = vadd.f32 %v1528, %v1592
        %v1594 = vpop.f32.mrb[0].mxu0
        %1595 = vmatprep.mubr.bf16.mxu0 %v829
        %1596 = vmatmul.mubr.bf16.gmra.mrb[0].mxu0 %v828
        %v1597 = vpop.f32.mrb[0].mxu0
        %v1598 = vadd.f32 %v1533, %v1597
        %v1599 = vpop.f32.mrb[0].mxu0
        %v1600 = vpop.f32.mrb[0].mxu0
        %v1601 = vadd.f32 %v1536, %v1600
        %v1602 = vpop.f32.mrb[0].mxu0
        %1603 = vdwg.mxu0
        %1604 = vmatprep.subr.bf16.mxu0 0
        %1605 = vmatpush1.bf16.msra.mxu0 %v1313
        %1606 = vmatprep.subr.bf16.mxu0 0
        %1607 = vmatpush1.bf16.msra.mxu0 %v1314
        %1608 = vmatprep.subr.bf16.mxu0 0
        %1609 = vmatpush1.bf16.msra.mxu0 %v1315
        %1610 = vmatprep.subr.bf16.mxu0 0
        %1611 = vmatpush1.bf16.msra.mxu0 %v1316
        %1612 = vmatprep.subr.bf16.mxu0 0
        %1613 = vmatpush1.bf16.msra.mxu0 %v1317
        %1614 = vmatprep.subr.bf16.mxu0 0
        %1615 = vmatpush1.bf16.msra.mxu0 %v1318
        %1616 = vmatprep.subr.bf16.mxu0 0
        %1617 = vmatpush1.bf16.msra.mxu0 %v1319
        %1618 = vmatprep.subr.bf16.mxu0 0
        %1619 = vmatpush1.bf16.msra.mxu0 %v1320
        %1620 = vmatprep.subr.bf16.mxu0 0
        %1621 = vmatpush1.bf16.msra.mxu0 %v1321
        %1622 = vmatprep.subr.bf16.mxu0 0
        %1623 = vmatpush1.bf16.msra.mxu0 %v1322
        %1624 = vmatprep.subr.bf16.mxu0 0
        %1625 = vmatpush1.bf16.msra.mxu0 %v1323
        %1626 = vmatprep.subr.bf16.mxu0 0
        %1627 = vmatpush1.bf16.msra.mxu0 %v1324
        %1628 = vmatprep.subr.bf16.mxu0 0
        %1629 = vmatpush1.bf16.msra.mxu0 %v1325
        %1630 = vmatprep.subr.bf16.mxu0 0
        %1631 = vmatpush1.bf16.msra.mxu0 %v1326
        %1632 = vmatprep.subr.bf16.mxu0 0
        %1633 = vmatpush1.bf16.msra.mxu0 %v1327
        %1634 = vmatprep.subr.bf16.mxu0 0
        %1635 = vmatpush1.bf16.msra.mxu0 %v1328
        %1636 = vmatprep.mubr.bf16.mxu0 %v804
        %1637 = vmatmul.mubr.bf16.gmra.mrb[0].mxu0 %v803
        %v1638 = vpop.f32.mrb[0].mxu0
        %v1639 = vadd.f32 %v1574, %v1638
        %v1640 = vpop.f32.mrb[0].mxu0
        %v1641 = vpop.f32.mrb[0].mxu0
        %v1642 = vadd.f32 %v1577, %v1641
        %v1643 = vpop.f32.mrb[0].mxu0
        %1644 = vmatprep.mubr.bf16.mxu0 %v813
        %1645 = vmatmul.mubr.bf16.gmra.mrb[0].mxu0 %v812
        %v1646 = vpop.f32.mrb[0].mxu0
        %v1647 = vadd.f32 %v1582, %v1646
        %v1648 = vpop.f32.mrb[0].mxu0
        %v1649 = vpop.f32.mrb[0].mxu0
        %v1650 = vadd.f32 %v1585, %v1649
        %v1651 = vpop.f32.mrb[0].mxu0
        %1652 = vmatprep.mubr.bf16.mxu0 %v822
        %1653 = vmatmul.mubr.bf16.gmra.mrb[0].mxu0 %v821
        %v1654 = vpop.f32.mrb[0].mxu0
        %v1655 = vadd.f32 %v1590, %v1654
        %v1656 = vpop.f32.mrb[0].mxu0
        %v1657 = vpop.f32.mrb[0].mxu0
        %v1658 = vadd.f32 %v1593, %v1657
        %v1659 = vpop.f32.mrb[0].mxu0
        %1660 = vmatprep.mubr.bf16.mxu0 %v831
        %1661 = vmatmul.mubr.bf16.gmra.mrb[0].mxu0 %v830
        %v1662 = vpop.f32.mrb[0].mxu0
        %v1663 = vadd.f32 %v1598, %v1662
        %v1664 = vpop.f32.mrb[0].mxu0
        %v1665 = vpop.f32.mrb[0].mxu0
        %v1666 = vadd.f32 %v1601, %v1665
        %v1667 = vpop.f32.mrb[0].mxu0
        %1668 = vdwg.mxu0
        %1669 = vmatprep.subr.bf16.mxu0 0
        %1670 = vmatpush1.bf16.msra.mxu0 %v1329
        %1671 = vmatprep.subr.bf16.mxu0 0
        %1672 = vmatpush1.bf16.msra.mxu0 %v1330
        %1673 = vmatprep.subr.bf16.mxu0 0
        %1674 = vmatpush1.bf16.msra.mxu0 %v1331
        %1675 = vmatprep.subr.bf16.mxu0 0
        %1676 = vmatpush1.bf16.msra.mxu0 %v1332
        %1677 = vmatprep.subr.bf16.mxu0 0
        %1678 = vmatpush1.bf16.msra.mxu0 %v1333
        %1679 = vmatprep.subr.bf16.mxu0 0
        %1680 = vmatpush1.bf16.msra.mxu0 %v1334
        %1681 = vmatprep.subr.bf16.mxu0 0
        %1682 = vmatpush1.bf16.msra.mxu0 %v1335
        %1683 = vmatprep.subr.bf16.mxu0 0
        %1684 = vmatpush1.bf16.msra.mxu0 %v1336
        %1685 = vmatprep.subr.bf16.mxu0 0
        %1686 = vmatpush1.bf16.msra.mxu0 0
        %1687 = vmatprep.subr.bf16.mxu0 0
        %1688 = vmatpush1.bf16.msra.mxu0 0
        %1689 = vmatprep.subr.bf16.mxu0 0
        %1690 = vmatpush1.bf16.msra.mxu0 0
        %1691 = vmatprep.subr.bf16.mxu0 0
        %1692 = vmatpush1.bf16.msra.mxu0 0
        %1693 = vmatprep.subr.bf16.mxu0 0
        %1694 = vmatpush1.bf16.msra.mxu0 0
        %1695 = vmatprep.subr.bf16.mxu0 0
        %1696 = vmatpush1.bf16.msra.mxu0 0
        %1697 = vmatprep.subr.bf16.mxu0 0
        %1698 = vmatpush1.bf16.msra.mxu0 0
        %1699 = vmatprep.subr.bf16.mxu0 0
        %1700 = vmatpush1.bf16.msra.mxu0 0
        %1701 = vmatprep.mubr.bf16.mxu0 0
        %1702 = vmatmul.mubr.bf16.gmra.mrb[0].mxu0 %v805
        %v1703 = vpop.f32.mrb[0].mxu0
        %v1704 = vadd.f32 %v1639, %v1703
        %v1705 = vpop.f32.mrb[0].mxu0
        %v1706 = vpop.f32.mrb[0].mxu0
        %v1707 = vadd.f32 %v1642, %v1706
        %v1708 = vpop.f32.mrb[0].mxu0
        %1709 = vmatprep.mubr.bf16.mxu0 0
        %1710 = vmatmul.mubr.bf16.gmra.mrb[0].mxu0 %v814
        %v1711 = vpop.f32.mrb[0].mxu0
        %v1712 = vadd.f32 %v1647, %v1711
        %v1713 = vpop.f32.mrb[0].mxu0
        %v1714 = vpop.f32.mrb[0].mxu0
        %v1715 = vadd.f32 %v1650, %v1714
        %v1716 = vpop.f32.mrb[0].mxu0
        %1717 = vmatprep.mubr.bf16.mxu0 0
        %1718 = vmatmul.mubr.bf16.gmra.mrb[0].mxu0 %v823
        %v1719 = vpop.f32.mrb[0].mxu0
        %v1720 = vadd.f32 %v1655, %v1719
        %v1721 = vpop.f32.mrb[0].mxu0
        %v1722 = vpop.f32.mrb[0].mxu0
        %v1723 = vadd.f32 %v1658, %v1722
        %v1724 = vpop.f32.mrb[0].mxu0
        %1725 = vmatprep.mubr.bf16.mxu0 0
        %1726 = vmatmul.mubr.bf16.gmra.mrb[0].mxu0 %v832
        %v1727 = vpop.f32.mrb[0].mxu0
        %v1728 = vadd.f32 %v1663, %v1727
        %v1729 = vpop.f32.mrb[0].mxu0
        %v1730 = vpop.f32.mrb[0].mxu0
        %v1731 = vadd.f32 %v1666, %v1730
        %v1732 = vpop.f32.mrb[0].mxu0
        %1733 = vdwg.mxu0
        %v1734 = vld [vmem:[%s5] sm:$0x1]
        %v1736 = vlaneseq
        %v1737 = vshrl.u32 %v1736, 7
        %v1738 = vsub.s32 0, %v1737
        %v1739 = vrot.slane %v1734, %v1738
        %v1741 = vmul.f32 %v1704, %v1739
        %v1742 = vmul.f32 %v1707, %v1739
        %v1743 = vmul.f32 %v1712, %v1739
        %v1744 = vmul.f32 %v1715, %v1739
        %v1745 = vmul.f32 %v1720, %v1739
        %v1746 = vmul.f32 %v1723, %v1739
        %v1747 = vmul.f32 %v1728, %v1739
        %v1748 = vmul.f32 %v1731, %v1739
        %v1749 = vld [vmem:[%s6] sm:$0x1]
        %v1751 = vlaneseq
        %v1752 = vshrl.u32 %v1751, 7
        %v1753 = vsub.s32 0, %v1752
        %v1754 = vrot.slane %v1749, %v1753
        %v1756 = vadd.f32 %v1741, %v1754
        %v1757 = vadd.f32 %v1742, %v1754
        %v1758 = vadd.f32 %v1743, %v1754
        %v1759 = vadd.f32 %v1744, %v1754
        %v1760 = vadd.f32 %v1745, %v1754
        %v1761 = vadd.f32 %v1746, %v1754
        %v1762 = vadd.f32 %v1747, %v1754
        %v1763 = vadd.f32 %v1748, %v1754
        %v1764 = vmax.f32 %v1756, 0.0
        %v1765 = vmax.f32 %v1757, 0.0
        %v1766 = vmax.f32 %v1758, 0.0
        %v1767 = vmax.f32 %v1759, 0.0
        %v1768 = vmax.f32 %v1760, 0.0
        %v1769 = vmax.f32 %v1761, 0.0
        %v1770 = vmax.f32 %v1762, 0.0
        %v1771 = vmax.f32 %v1763, 0.0
        %v1772 = vpack.c.bf16 %v1765, %v1764
        %v1773 = vpack.c.bf16 %v1767, %v1766
        %v1774 = vpack.c.bf16 %v1769, %v1768
        %v1775 = vpack.c.bf16 %v1771, %v1770
        %v1776 = vld [vmem:[#allocation10] sm:$0xf]
        %v1777 = vld [vmem:[#allocation10 + $0x4] sm:$0xf]
        %v1778 = vld [vmem:[#allocation10 + $0x8] sm:$0xf]
        %v1779 = vld [vmem:[#allocation10 + $0xc] sm:$0xf]
        %v1780 = vld [vmem:[#allocation10 + $0x10] sm:$0xf]
        %v1781 = vld [vmem:[#allocation10 + $0x14] sm:$0xf]
        %v1782 = vld [vmem:[#allocation10 + $0x18] sm:$0xf]
        %v1783 = vld [vmem:[#allocation10 + $0x1c] sm:$0xf]
        %v1784 = vld [vmem:[#allocation10 + $0x20] sm:$0xf]
        %v1785 = vld [vmem:[#allocation10 + $0x24] sm:$0xf]
        %v1786 = vld [vmem:[#allocation10 + $0x28] sm:$0xf]
        %v1787 = vld [vmem:[#allocation10 + $0x2c] sm:$0xf]
        %v1788 = vld [vmem:[#allocation10 + $0x30] sm:$0xf]
        %v1789 = vld [vmem:[#allocation10 + $0x34] sm:$0xf]
        %v1790 = vld [vmem:[#allocation10 + $0x38] sm:$0xf]
        %v1791 = vld [vmem:[#allocation10 + $0x3c] sm:$0xf]
        %v1808 = vunpack.c.l.b16 %v1776
        %v1809 = vunpack.c.l.b16 %v1777
        %v1810 = vunpack.c.l.b16 %v1778
        %v1811 = vunpack.c.l.b16 %v1779
        %v1812 = vunpack.c.l.b16 %v1780
        %v1813 = vunpack.c.l.b16 %v1781
        %v1814 = vunpack.c.l.b16 %v1782
        %v1815 = vunpack.c.l.b16 %v1783
        %v1816 = vunpack.c.l.b16 %v1784
        %v1817 = vunpack.c.l.b16 %v1785
        %v1818 = vunpack.c.l.b16 %v1786
        %v1819 = vunpack.c.l.b16 %v1787
        %v1820 = vunpack.c.l.b16 %v1788
        %v1821 = vunpack.c.l.b16 %v1789
        %v1822 = vunpack.c.l.b16 %v1790
        %v1823 = vunpack.c.l.b16 %v1791
        %v1824 = vpack.c.b16 %v1809, %v1808
        %v1825 = vpack.c.b16 %v1811, %v1810
        %v1826 = vpack.c.b16 %v1813, %v1812
        %v1827 = vpack.c.b16 %v1815, %v1814
        %v1828 = vpack.c.b16 %v1817, %v1816
        %v1829 = vpack.c.b16 %v1819, %v1818
        %v1830 = vpack.c.b16 %v1821, %v1820
        %v1831 = vpack.c.b16 %v1823, %v1822
        %1840 = vmatprep.subr.bf16.mxu0 0
        %1841 = vmatpush1.bf16.msra.mxu0 %v1824
        %1842 = vmatprep.subr.bf16.mxu0 0
        %1843 = vmatpush1.bf16.msra.mxu0 %v1825
        %1844 = vmatprep.subr.bf16.mxu0 0
        %1845 = vmatpush1.bf16.msra.mxu0 %v1826
        %1846 = vmatprep.subr.bf16.mxu0 0
        %1847 = vmatpush1.bf16.msra.mxu0 %v1827
        %1848 = vmatprep.subr.bf16.mxu0 0
        %1849 = vmatpush1.bf16.msra.mxu0 %v1828
        %1850 = vmatprep.subr.bf16.mxu0 0
        %1851 = vmatpush1.bf16.msra.mxu0 %v1829
        %1852 = vmatprep.subr.bf16.mxu0 0
        %1853 = vmatpush1.bf16.msra.mxu0 %v1830
        %1854 = vmatprep.subr.bf16.mxu0 0
        %1855 = vmatpush1.bf16.msra.mxu0 %v1831
        %1856 = vmatprep.subr.bf16.mxu0 0
        %1857 = vmatpush1.bf16.msra.mxu0 0
        %1858 = vmatprep.subr.bf16.mxu0 0
        %1859 = vmatpush1.bf16.msra.mxu0 0
        %1860 = vmatprep.subr.bf16.mxu0 0
        %1861 = vmatpush1.bf16.msra.mxu0 0
        %1862 = vmatprep.subr.bf16.mxu0 0
        %1863 = vmatpush1.bf16.msra.mxu0 0
        %1864 = vmatprep.subr.bf16.mxu0 0
        %1865 = vmatpush1.bf16.msra.mxu0 0
        %1866 = vmatprep.subr.bf16.mxu0 0
        %1867 = vmatpush1.bf16.msra.mxu0 0
        %1868 = vmatprep.subr.bf16.mxu0 0
        %1869 = vmatpush1.bf16.msra.mxu0 0
        %1870 = vmatprep.subr.bf16.mxu0 0
        %1871 = vmatpush1.bf16.msra.mxu0 0
        %1872 = vmatprep.mubr.bf16.mxu0 0
        %1873 = vmatmul.mubr.bf16.gmra.mrb[0].mxu0 %v1772
        %v1874 = vpop.f32.mrb[0].mxu0
        %v1875 = vadd.f32 0.0, %v1874
        %v1876 = vpop.f32.mrb[0].mxu0
        %v1877 = vpop.f32.mrb[0].mxu0
        %v1878 = vadd.f32 0.0, %v1877
        %v1879 = vpop.f32.mrb[0].mxu0
        %1880 = vmatprep.mubr.bf16.mxu0 0
        %1881 = vmatmul.mubr.bf16.gmra.mrb[0].mxu0 %v1773
        %v1882 = vpop.f32.mrb[0].mxu0
        %v1883 = vadd.f32 0.0, %v1882
        %v1884 = vpop.f32.mrb[0].mxu0
        %v1885 = vpop.f32.mrb[0].mxu0
        %v1886 = vadd.f32 0.0, %v1885
        %v1887 = vpop.f32.mrb[0].mxu0
        %1888 = vmatprep.mubr.bf16.mxu0 0
        %1889 = vmatmul.mubr.bf16.gmra.mrb[0].mxu0 %v1774
        %v1890 = vpop.f32.mrb[0].mxu0
        %v1891 = vadd.f32 0.0, %v1890
        %v1892 = vpop.f32.mrb[0].mxu0
        %v1893 = vpop.f32.mrb[0].mxu0
        %v1894 = vadd.f32 0.0, %v1893
        %v1895 = vpop.f32.mrb[0].mxu0
        %1896 = vmatprep.mubr.bf16.mxu0 0
        %1897 = vmatmul.mubr.bf16.gmra.mrb[0].mxu0 %v1775
        %v1898 = vpop.f32.mrb[0].mxu0
        %v1899 = vadd.f32 0.0, %v1898
        %v1900 = vpop.f32.mrb[0].mxu0
        %v1901 = vpop.f32.mrb[0].mxu0
        %v1902 = vadd.f32 0.0, %v1901
        %v1903 = vpop.f32.mrb[0].mxu0
        %1904 = vdwg.mxu0
        %v1905 = vld [vmem:[%s8] sm:$0x1]
        %v1907 = vlaneseq
        %v1908 = vshrl.u32 %v1907, 7
        %v1909 = vsub.s32 0, %v1908
        %v1910 = vrot.slane %v1905, %v1909
        %v1912 = vmul.f32 %v1875, %v1910
        %v1913 = vmul.f32 %v1878, %v1910
        %v1914 = vmul.f32 %v1883, %v1910
        %v1915 = vmul.f32 %v1886, %v1910
        %v1916 = vmul.f32 %v1891, %v1910
        %v1917 = vmul.f32 %v1894, %v1910
        %v1918 = vmul.f32 %v1899, %v1910
        %v1919 = vmul.f32 %v1902, %v1910
        %v1920 = vld [vmem:[%s9] sm:$0x1]
        %v1922 = vlaneseq
        %v1923 = vshrl.u32 %v1922, 7
        %v1924 = vsub.s32 0, %v1923
        %v1925 = vrot.slane %v1920, %v1924
        %v1927 = vadd.f32 %v1912, %v1925
        %v1928 = vadd.f32 %v1913, %v1925
        %v1929 = vadd.f32 %v1914, %v1925
        %v1930 = vadd.f32 %v1915, %v1925
        %v1931 = vadd.f32 %v1916, %v1925
        %v1932 = vadd.f32 %v1917, %v1925
        %v1933 = vadd.f32 %v1918, %v1925
        %v1934 = vadd.f32 %v1919, %v1925
        %v1935 = vld [vmem:[%s373] sm:$0xf]
        %v1936 = vld [vmem:[%s373 + $0x4] sm:$0xf]
        %v1937 = vld [vmem:[%s373 + $0x8] sm:$0xf]
        %v1938 = vld [vmem:[%s373 + $0xc] sm:$0xf]
        %v1939 = vld [vmem:[%s373 + $0x10] sm:$0xf]
        %v1940 = vld [vmem:[%s373 + $0x14] sm:$0xf]
        %v1941 = vld [vmem:[%s373 + $0x18] sm:$0xf]
        %v1942 = vld [vmem:[%s373 + $0x1c] sm:$0xf]
        %v1943 = vunpack.c.l.bf16 %v1935
        %v1944 = vunpack.c.l.bf16 %v1936
        %v1945 = vunpack.c.l.bf16 %v1937
        %v1946 = vunpack.c.l.bf16 %v1938
        %v1947 = vunpack.c.l.bf16 %v1939
        %v1948 = vunpack.c.l.bf16 %v1940
        %v1949 = vunpack.c.l.bf16 %v1941
        %v1950 = vunpack.c.l.bf16 %v1942
        %v1951 = vadd.f32 %v1927, %v1943
        %v1952 = vadd.f32 %v1928, %v1944
        %v1953 = vadd.f32 %v1929, %v1945
        %v1954 = vadd.f32 %v1930, %v1946
        %v1955 = vadd.f32 %v1931, %v1947
        %v1956 = vadd.f32 %v1932, %v1948
        %v1957 = vadd.f32 %v1933, %v1949
        %v1958 = vadd.f32 %v1934, %v1950
        %v1959 = vmax.f32 %v1951, 0.0
        %v1960 = vmax.f32 %v1952, 0.0
        %v1961 = vmax.f32 %v1953, 0.0
        %v1962 = vmax.f32 %v1954, 0.0
        %v1963 = vmax.f32 %v1955, 0.0
        %v1964 = vmax.f32 %v1956, 0.0
        %v1965 = vmax.f32 %v1957, 0.0
        %v1966 = vmax.f32 %v1958, 0.0
        %1967 = vst [vmem:[%s421] sm:$0xff] %v1959
        %1968 = vst [vmem:[%s421 + $0x8] sm:$0xff] %v1960
        %1969 = vst [vmem:[%s421 + $0x10] sm:$0xff] %v1961
        %1970 = vst [vmem:[%s421 + $0x18] sm:$0xff] %v1962
        %1971 = vst [vmem:[%s421 + $0x20] sm:$0xff] %v1963
        %1972 = vst [vmem:[%s421 + $0x28] sm:$0xff] %v1964
        %1973 = vst [vmem:[%s421 + $0x30] sm:$0xff] %v1965
        %1974 = vst [vmem:[%s421 + $0x38] sm:$0xff] %v1966
        %s1975 = sand.u32 %s252, 1
        %s1976 = scalar_lea.sflag [#allocation6], %s1975
        %s1977 = sand.u32 %s252, 1
        %s1978 = smul.addr %s1977, 64
        %s1979 = scalar_lea.vmem [#allocation12], %s1978
        // Predicated region
        $region77: #{tpu_custom_call.1} parent=59 // pred_check
          %p1980 = pneg %p262
        $region78: #{tpu_custom_call.1} parent=59 // pred_check_branch
          %1982 = sbr.rel (%p1980) target = $region80
        $region79: #{tpu_custom_call.1} parent=59 // pred_region
          %s1984 = ssub.s32 1024, 1024
          %1985 = vsyncadd %s1976, %s1984
          %s1986 = smul.addr %s29, 8
          %s1987 = smul.addr %s1986, 128
          %s1988 = scalar_lea.hbm %s10, %s1987
          %s1989 = sshll.u32 %s1979, 4
          %s1990 = int_to_ptr.vmem [resolvable:$true] %s1989
          %1995 = dma.vmem_to_hbm [thread:$0]  %s1990, 1024, %s1988, %s1976, 128, 128, 8
        $region80: #{tpu_custom_call.1} parent=59 // pred_fallthru
          _
      $region60: #{tpu_custom_call.1} parent=5 // pred_fallthru
        _
      %p1996 = scmp.le.s32.totalorder 2, %s24
      // Predicated region
      $region81: #{tpu_custom_call.1} parent=5 // pred_check
        %p1997 = pneg %p1996
      $region82: #{tpu_custom_call.1} parent=5 // pred_check_branch
        %1999 = sbr.rel (%p1997) target = $region84
      $region83: #{tpu_custom_call.1} parent=5 // pred_region
        %s2000 = ssub.s32 %s24, 2
        // Predicated region
        $region85: #{tpu_custom_call.1} parent=83 // pred_check
          %p2001 = pneg %p268
        $region86: #{tpu_custom_call.1} parent=83 // pred_check_branch
          %2003 = sbr.rel (%p2001) target = $region88
        $region87: #{tpu_custom_call.1} parent=83 // pred_region
          %s2004 = sand.u32 %s253, 1
          %s2005 = scalar_lea.sflag [#allocation6], %s2004
          %s2006 = sand.u32 %s253, 1
          %s2007 = smul.addr %s2006, 64
          %s2008 = scalar_lea.vmem [#allocation12], %s2007
          %2009 = dma.done %s2005, 1024
        $region88: #{tpu_custom_call.1} parent=83 // pred_fallthru
          _
      $region84: #{tpu_custom_call.1} parent=5 // pred_fallthru
        _
    $region6: #{tpu_custom_call.1} parent=1 // loop_footer
      %s28 = sadd.s32 1, %s24
    $region7: #{tpu_custom_call.1} parent=1 // loop_footer_branch
      %23 = sbr.rel target = $region3
    $region8: #{tpu_custom_call.1} parent=1 // loop_exit
      _
    %2010 = vsyncpa [#allocation5], 1
    %s2011 = scalar_lea.sflag [#allocation5], 1
    %2012 = vsyncpa %s2011, 1
    %2013 = vsyncpa [#allocation8], 1
    %2014 = vsyncpa [#allocation11], 1
    %2015 = vsyncpa [#allocation6], 1
    %s2016 = scalar_lea.sflag [#allocation6], 1
    %2017 = vsyncpa %s2016, 1

</llo_original>
